<compile_context>
chip_gen: v6e
topology: v6e:2x2x1
jax: 0.10.0
libtpu: 0.0.40
codegen_flags: <defaults>
</compile_context>

<pallas_src>
import functools

import jax
import jax.numpy as jnp
from jax import lax
from jax.experimental import pallas as pl
from jax.experimental.pallas import tpu as pltpu
from jax.scipy.special import logsumexp


def _round_up(x, m):
    return (x + m - 1) // m * m


def _nt_xent_kernel(p_row_ref, p_col_ref, o_ref,
                    qhat_ref, m_ref, s_ref, pos_ref,
                    *, batch_size, n_valid, temperature, block):
    i = pl.program_id(0)          # row tile
    j = pl.program_id(1)          # column tile (reduction axis, innermost)
    nj = pl.num_programs(1)

    inv_t = jnp.float32(1.0 / temperature)
    neg_big = jnp.float32(-1e30)          # finite "minus infinity"
    eps = jnp.float32(1e-8)

    # ---- once per row tile: normalize row block, fold 1/T in, reset LSE state.
    @pl.when(j == 0)
    def _init():
        q = p_row_ref[...].astype(jnp.float32)
        qn = jnp.sqrt(jnp.sum(q * q, axis=-1, keepdims=True))
        qhat_ref[...] = (q * (inv_t / jnp.maximum(qn, eps))).astype(qhat_ref.dtype)
        m_ref[...] = jnp.full(m_ref.shape, neg_big, dtype=jnp.float32)
        s_ref[...] = jnp.zeros(s_ref.shape, dtype=jnp.float32)
        pos_ref[...] = jnp.zeros(pos_ref.shape, dtype=jnp.float32)

    # ---- normalize the column block (O(T*D), cheap vs. the O(T*T*D) matmul).
    k = p_col_ref[...].astype(jnp.float32)
    kn = jnp.sqrt(jnp.sum(k * k, axis=-1, keepdims=True))
    khat = (k * (jnp.float32(1.0) / jnp.maximum(kn, eps))).astype(qhat_ref.dtype)

    # sim[r, c] = cos(p_r, p_c) / T.  MXU contracts over the feature dim directly
    # (no explicit transpose / XLU pass).
    sim = lax.dot_general(qhat_ref[...], khat,
                          dimension_numbers=(((1,), (1,)), ((), ())),
                          preferred_element_type=jnp.float32)        # [T, T] f32

    row = i * block + lax.broadcasted_iota(jnp.int32, (block, 1), 0)  # [T, 1]
    col = j * block + lax.broadcasted_iota(jnp.int32, (1, block), 1)  # [1, T]
    valid_col = col < n_valid
    is_diag = col == row
    is_pos = (col == row + batch_size) | (col == row - batch_size)

    # Positive logit: exactly one matching valid column per row across the j sweep.
    pos_ref[...] += jnp.sum(jnp.where(is_pos & valid_col, sim, 0.0),
                            axis=-1, keepdims=True)

    # Online logsumexp over every column except the diagonal (denominator of the
    # CE includes the positive).  Mask BEFORE the exp -> no inf/NaN arithmetic.
    neg = jnp.where(valid_col & jnp.logical_not(is_diag), sim, neg_big)
    m_new = jnp.maximum(m_ref[...], jnp.max(neg, axis=-1, keepdims=True))
    alpha = jnp.exp(m_ref[...] - m_new)
    s_ref[...] = alpha * s_ref[...] + jnp.sum(jnp.exp(neg - m_new),
                                              axis=-1, keepdims=True)
    m_ref[...] = m_new

    # ---- last column tile: per-row CE loss, zero padded rows, single store.
    @pl.when(j == nj - 1)
    def _finalize():
        loss = -pos_ref[...] + m_ref[...] + jnp.log(s_ref[...])       # [T, 1]
        o_ref[...] = jnp.where(row < n_valid, loss, 0.0)


def nt_xent_loss(z_i, z_j, temperature=0.1):
    """NT-Xent loss matching the PyTorch NT_Xent module (CE reduction='sum' / 2B)."""
    b, d = z_i.shape
    n = 2 * b
    p = jnp.concatenate([z_i, z_j], axis=0)                  # [2B, D]

    # Lane-dense feature dim; zero padding preserves dot products and norms.
    d_pad = _round_up(d, 128)
    # Square sim tile, multiple of 128 (MXU/VPU friendly), capped for v7x's 64 MiB VMEM.
    block = min(512, _round_up(n, 128))
    n_pad = _round_up(n, block)
    nb = n_pad // block

    p_pad = jnp.pad(p, ((0, n_pad - n), (0, d_pad - d)))

    # bf16 inputs feed the MXU in bf16 (f32 accumulation); otherwise stay f32.
    mm_dtype = jnp.bfloat16 if p.dtype == jnp.bfloat16 else jnp.float32

    kernel = functools.partial(
        _nt_xent_kernel, batch_size=b, n_valid=n,
        temperature=float(temperature), block=block)

    per_row = pl.pallas_call(
        kernel,
        out_shape=jax.ShapeDtypeStruct((n_pad, 1), jnp.float32),
        grid_spec=pltpu.PrefetchScalarGridSpec(
            num_scalar_prefetch=0,
            grid=(nb, nb),                                    # (row tiles, col tiles)
            in_specs=[pl.BlockSpec((block, d_pad), lambda i, j: (i, 0)),   # row block
                      pl.BlockSpec((block, d_pad), lambda i, j: (j, 0))],  # col block
            out_specs=pl.BlockSpec((block, 1), lambda i, j: (i, 0)),
            scratch_shapes=[pltpu.VMEM((block, d_pad), mm_dtype),   # normalized rows
                            pltpu.VMEM((block, 1), jnp.float32),    # running max
                            pltpu.VMEM((block, 1), jnp.float32),    # running sum
                            pltpu.VMEM((block, 1), jnp.float32)]),  # positive logit
        compiler_params=pltpu.CompilerParams(
            dimension_semantics=("parallel", "arbitrary"),
            vmem_limit_bytes=48 * 1024 * 1024),
    )(p_pad, p_pad)

    return jnp.sum(per_row) / jnp.float32(n)


def _nt_xent_ref(z_i, z_j, temperature=0.1):
    # Pure-JAX reference mirroring the PyTorch module exactly.
    b = z_i.shape[0]
    p = jnp.concatenate([z_i, z_j], axis=0).astype(jnp.float32)
    n = 2 * b
    norm = jnp.sqrt(jnp.sum(p * p, axis=-1, keepdims=True))
    sim = (p @ p.T) / jnp.maximum(norm * norm.T, 1e-8) / temperature
    idx = jnp.arange(n)
    pos = sim[idx, (idx + b) % n]
    diag = jnp.eye(n, dtype=bool)
    sim_no_diag = jnp.where(diag, -jnp.inf, sim)
    lse = logsumexp(sim_no_diag, axis=-1)
    return jnp.sum(-pos + lse) / n


if __name__ == "__main__":
    key = jax.random.PRNGKey(0)
    k1, k2 = jax.random.split(key)
    batch_size, dim = 8, 32
    z_i = jax.random.normal(k1, (batch_size, dim), dtype=jnp.float32)
    z_j = jax.random.normal(k2, (batch_size, dim), dtype=jnp.float32)

    loss = jax.block_until_ready(nt_xent_loss(z_i, z_j, temperature=0.1))
    ref = jax.block_until_ready(_nt_xent_ref(z_i, z_j, temperature=0.1))

    assert jnp.isfinite(loss), "kernel produced non-finite loss"
    assert jnp.allclose(loss, ref, rtol=1e-4, atol=1e-4), (loss, ref)
    print("KERNEL_OK")
</pallas_src>

<mosaic_0001>
module attributes {stable_mosaic.version = 11 : i64} {
  func.func @_nt_xent_kernel(%arg0: i32, %arg1: i32, %arg2: memref<128x128xf32, #tpu.memory_space<vmem>>, %arg3: memref<128x128xf32, #tpu.memory_space<vmem>>, %arg4: memref<128x1xf32, #tpu.memory_space<vmem>>, %arg5: memref<128x128xf32, #tpu.memory_space<vmem>>, %arg6: memref<128x1xf32, #tpu.memory_space<vmem>>, %arg7: memref<128x1xf32, #tpu.memory_space<vmem>>, %arg8: memref<128x1xf32, #tpu.memory_space<vmem>>) attributes {dimension_semantics = [#tpu.dimension_semantics<parallel>, #tpu.dimension_semantics<arbitrary>], iteration_bounds = array<i64: 1, 1>, scalar_prefetch = 0 : i64, scratch_operands = 4 : i64, tpu.core_type = #tpu.core_type<tc>, window_params = [{transform_indices = @transform_0, window_bounds = array<i64: 128, 128>}, {transform_indices = @transform_1, window_bounds = array<i64: 128, 128>}, {transform_indices = @transform_2, window_bounds = array<i64: 128, 1>}]} {
    %c0_i32 = arith.constant 0 : i32
    %0 = arith.cmpi eq, %arg1, %c0_i32 : i32
    %1 = arith.extui %0 : i1 to i32
    %cst = arith.constant 9.99999993E-9 : f32
    %cst_0 = arith.constant 1.000000e+01 : f32
    %cst_1 = arith.constant -1.000000e+30 : f32
    %c0_i32_2 = arith.constant 0 : i32
    %2 = arith.cmpi ne, %1, %c0_i32_2 : i32
    scf.if %2 {
      %c0_34 = arith.constant 0 : index
      %c0_35 = arith.constant 0 : index
      %74 = vector.load %arg2[%c0_34, %c0_35] : memref<128x128xf32, #tpu.memory_space<vmem>>, vector<128x128xf32>
      %75 = arith.mulf %74, %74 : vector<128x128xf32>
      %cst_36 = arith.constant dense<0.000000e+00> : vector<128xf32>
      %76 = vector.multi_reduction <add>, %75, %cst_36 [1] : vector<128x128xf32> to vector<128xf32>
      %77 = vector.shape_cast %76 : vector<128xf32> to vector<128x1xf32>
      %78 = math.sqrt %77 : vector<128x1xf32>
      %79 = vector.broadcast %cst : f32 to vector<128x1xf32>
      %80 = arith.maximumf %78, %79 : vector<128x1xf32>
      %81 = vector.broadcast %cst_0 : f32 to vector<128x1xf32>
      %82 = arith.divf %81, %80 : vector<128x1xf32>
      %83 = vector.broadcast %82 : vector<128x1xf32> to vector<128x128xf32>
      %84 = arith.mulf %74, %83 : vector<128x128xf32>
      %c0_37 = arith.constant 0 : index
      %c0_38 = arith.constant 0 : index
      %85 = vector.load %arg5[%c0_37, %c0_38] : memref<128x128xf32, #tpu.memory_space<vmem>>, vector<128x128xf32>
      tpu.vector_store %arg5[%c0_37, %c0_38], %84 {strides = array<i32>} : memref<128x128xf32, #tpu.memory_space<vmem>>, vector<128x128xf32>,
      %86 = vector.broadcast %cst_1 : f32 to vector<128x1xf32>
      %c0_39 = arith.constant 0 : index
      %c0_40 = arith.constant 0 : index
      %87 = vector.load %arg6[%c0_39, %c0_40] : memref<128x1xf32, #tpu.memory_space<vmem>>, vector<128x1xf32>
      tpu.vector_store %arg6[%c0_39, %c0_40], %86 {strides = array<i32>} : memref<128x1xf32, #tpu.memory_space<vmem>>, vector<128x1xf32>,
      %cst_41 = arith.constant 0.000000e+00 : f32
      %88 = vector.broadcast %cst_41 : f32 to vector<128x1xf32>
      %c0_42 = arith.constant 0 : index
      %c0_43 = arith.constant 0 : index
      %89 = vector.load %arg7[%c0_42, %c0_43] : memref<128x1xf32, #tpu.memory_space<vmem>>, vector<128x1xf32>
      tpu.vector_store %arg7[%c0_42, %c0_43], %88 {strides = array<i32>} : memref<128x1xf32, #tpu.memory_space<vmem>>, vector<128x1xf32>,
      %cst_44 = arith.constant 0.000000e+00 : f32
      %90 = vector.broadcast %cst_44 : f32 to vector<128x1xf32>
      %c0_45 = arith.constant 0 : index
      %c0_46 = arith.constant 0 : index
      %91 = vector.load %arg8[%c0_45, %c0_46] : memref<128x1xf32, #tpu.memory_space<vmem>>, vector<128x1xf32>
      tpu.vector_store %arg8[%c0_45, %c0_46], %90 {strides = array<i32>} : memref<128x1xf32, #tpu.memory_space<vmem>>, vector<128x1xf32>,
    } else {
    }
    %c0 = arith.constant 0 : index
    %c0_3 = arith.constant 0 : index
    %3 = vector.load %arg3[%c0, %c0_3] : memref<128x128xf32, #tpu.memory_space<vmem>>, vector<128x128xf32>
    %4 = arith.mulf %3, %3 : vector<128x128xf32>
    %cst_4 = arith.constant dense<0.000000e+00> : vector<128xf32>
    %5 = vector.multi_reduction <add>, %4, %cst_4 [1] : vector<128x128xf32> to vector<128xf32>
    %6 = vector.shape_cast %5 : vector<128xf32> to vector<128x1xf32>
    %7 = math.sqrt %6 : vector<128x1xf32>
    %cst_5 = arith.constant 9.99999993E-9 : f32
    %8 = vector.broadcast %cst_5 : f32 to vector<128x1xf32>
    %9 = arith.maximumf %7, %8 : vector<128x1xf32>
    %cst_6 = arith.constant 1.000000e+00 : f32
    %10 = vector.broadcast %cst_6 : f32 to vector<128x1xf32>
    %11 = arith.divf %10, %9 : vector<128x1xf32>
    %12 = vector.broadcast %11 : vector<128x1xf32> to vector<128x128xf32>
    %13 = arith.mulf %3, %12 : vector<128x128xf32>
    %c0_7 = arith.constant 0 : index
    %c0_8 = arith.constant 0 : index
    %14 = vector.load %arg5[%c0_7, %c0_8] : memref<128x128xf32, #tpu.memory_space<vmem>>, vector<128x128xf32>
    %cst_9 = arith.constant dense<0.000000e+00> : vector<128x128xf32>
    %15 = tpu.matmul %14, %13, %cst_9 {dimension_numbers = #tpu.dot_dimension_numbers<[1], [1], [0], [0], [0, 0, 1, 0], [], []>} : vector<128x128xf32>, vector<128x128xf32>, vector<128x128xf32> -> vector<128x128xf32>
    %c128_i32 = arith.constant 128 : i32
    %16 = arith.muli %arg0, %c128_i32 : i32
    %17 = tpu.iota {dimensions = array<i32: 0>} : vector<128x1xi32>
    %18 = vector.broadcast %16 : i32 to vector<128x1xi32>
    %19 = arith.addi %18, %17 : vector<128x1xi32>
    %c128_i32_10 = arith.constant 128 : i32
    %20 = arith.muli %arg1, %c128_i32_10 : i32
    %21 = tpu.iota {dimensions = array<i32: 1>} : vector<1x128xi32>
    %22 = vector.broadcast %20 : i32 to vector<1x128xi32>
    %23 = arith.addi %22, %21 : vector<1x128xi32>
    %c16_i32 = arith.constant 16 : i32
    %24 = vector.broadcast %c16_i32 : i32 to vector<1x128xi32>
    %25 = arith.cmpi slt, %23, %24 : vector<1x128xi32>
    %26 = vector.broadcast %23 : vector<1x128xi32> to vector<128x128xi32>
    %27 = vector.broadcast %19 : vector<128x1xi32> to vector<128x128xi32>
    %28 = arith.cmpi eq, %26, %27 : vector<128x128xi32>
    %c8_i32 = arith.constant 8 : i32
    %29 = vector.broadcast %c8_i32 : i32 to vector<128x1xi32>
    %30 = arith.addi %19, %29 : vector<128x1xi32>
    %31 = vector.broadcast %23 : vector<1x128xi32> to vector<128x128xi32>
    %32 = vector.broadcast %30 : vector<128x1xi32> to vector<128x128xi32>
    %33 = arith.cmpi eq, %31, %32 : vector<128x128xi32>
    %c8_i32_11 = arith.constant 8 : i32
    %34 = vector.broadcast %c8_i32_11 : i32 to vector<128x1xi32>
    %35 = arith.subi %19, %34 : vector<128x1xi32>
    %36 = vector.broadcast %23 : vector<1x128xi32> to vector<128x128xi32>
    %37 = vector.broadcast %35 : vector<128x1xi32> to vector<128x128xi32>
    %38 = arith.cmpi eq, %36, %37 : vector<128x128xi32>
    %39 = arith.ori %33, %38 : vector<128x128xi1>
    %c0_12 = arith.constant 0 : index
    %c0_13 = arith.constant 0 : index
    %40 = vector.load %arg8[%c0_12, %c0_13] : memref<128x1xf32, #tpu.memory_space<vmem>>, vector<128x1xf32>
    %41 = vector.broadcast %25 : vector<1x128xi1> to vector<128x128xi1>
    %42 = arith.andi %39, %41 : vector<128x128xi1>
    %cst_14 = arith.constant 0.000000e+00 : f32
    %43 = vector.broadcast %cst_14 : f32 to vector<128x128xf32>
    %44 = arith.select %42, %15, %43 : vector<128x128xi1>, vector<128x128xf32>
    %cst_15 = arith.constant dense<0.000000e+00> : vector<128xf32>
    %45 = vector.multi_reduction <add>, %44, %cst_15 [1] : vector<128x128xf32> to vector<128xf32>
    %46 = vector.shape_cast %45 : vector<128xf32> to vector<128x1xf32>
    %47 = arith.addf %40, %46 : vector<128x1xf32>
    %c0_16 = arith.constant 0 : index
    %c0_17 = arith.constant 0 : index
    %48 = vector.load %arg8[%c0_16, %c0_17] : memref<128x1xf32, #tpu.memory_space<vmem>>, vector<128x1xf32>
    tpu.vector_store %arg8[%c0_16, %c0_17], %47 {strides = array<i32>} : memref<128x1xf32, #tpu.memory_space<vmem>>, vector<128x1xf32>,
    %cst_18 = arith.constant dense<true> : vector<128x128xi1>
    %49 = arith.xori %28, %cst_18 : vector<128x128xi1>
    %50 = vector.broadcast %25 : vector<1x128xi1> to vector<128x128xi1>
    %51 = arith.andi %50, %49 : vector<128x128xi1>
    %cst_19 = arith.constant -1.000000e+30 : f32
    %52 = vector.broadcast %cst_19 : f32 to vector<128x128xf32>
    %53 = arith.select %51, %15, %52 : vector<128x128xi1>, vector<128x128xf32>
    %c0_20 = arith.constant 0 : index
    %c0_21 = arith.constant 0 : index
    %54 = vector.load %arg6[%c0_20, %c0_21] : memref<128x1xf32, #tpu.memory_space<vmem>>, vector<128x1xf32>
    %cst_22 = arith.constant dense<0xFF800000> : vector<128xf32>
    %55 = vector.multi_reduction <maximumf>, %53, %cst_22 [1] : vector<128x128xf32> to vector<128xf32>
    %56 = vector.shape_cast %55 : vector<128xf32> to vector<128x1xf32>
    %57 = arith.maximumf %54, %56 : vector<128x1xf32>
    %c0_23 = arith.constant 0 : index
    %c0_24 = arith.constant 0 : index
    %58 = vector.load %arg6[%c0_23, %c0_24] : memref<128x1xf32, #tpu.memory_space<vmem>>, vector<128x1xf32>
    %59 = arith.subf %58, %57 : vector<128x1xf32>
    %60 = math.exp %59 : vector<128x1xf32>
    %c0_25 = arith.constant 0 : index
    %c0_26 = arith.constant 0 : index
    %61 = vector.load %arg7[%c0_25, %c0_26] : memref<128x1xf32, #tpu.memory_space<vmem>>, vector<128x1xf32>
    %62 = arith.mulf %60, %61 : vector<128x1xf32>
    %63 = vector.broadcast %57 : vector<128x1xf32> to vector<128x128xf32>
    %64 = arith.subf %53, %63 : vector<128x128xf32>
    %65 = math.exp %64 : vector<128x128xf32>
    %cst_27 = arith.constant dense<0.000000e+00> : vector<128xf32>
    %66 = vector.multi_reduction <add>, %65, %cst_27 [1] : vector<128x128xf32> to vector<128xf32>
    %67 = vector.shape_cast %66 : vector<128xf32> to vector<128x1xf32>
    %68 = arith.addf %62, %67 : vector<128x1xf32>
    %c0_28 = arith.constant 0 : index
    %c0_29 = arith.constant 0 : index
    %69 = vector.load %arg7[%c0_28, %c0_29] : memref<128x1xf32, #tpu.memory_space<vmem>>, vector<128x1xf32>
    tpu.vector_store %arg7[%c0_28, %c0_29], %68 {strides = array<i32>} : memref<128x1xf32, #tpu.memory_space<vmem>>, vector<128x1xf32>,
    %c0_30 = arith.constant 0 : index
    %c0_31 = arith.constant 0 : index
    %70 = vector.load %arg6[%c0_30, %c0_31] : memref<128x1xf32, #tpu.memory_space<vmem>>, vector<128x1xf32>
    tpu.vector_store %arg6[%c0_30, %c0_31], %57 {strides = array<i32>} : memref<128x1xf32, #tpu.memory_space<vmem>>, vector<128x1xf32>,
    %c0_i32_32 = arith.constant 0 : i32
    %71 = arith.cmpi eq, %arg1, %c0_i32_32 : i32
    %72 = arith.extui %71 : i1 to i32
    %c0_i32_33 = arith.constant 0 : i32
    %73 = arith.cmpi ne, %72, %c0_i32_33 : i32
    scf.if %73 {
      %c0_34 = arith.constant 0 : index
      %c0_35 = arith.constant 0 : index
      %74 = vector.load %arg8[%c0_34, %c0_35] : memref<128x1xf32, #tpu.memory_space<vmem>>, vector<128x1xf32>
      %cst_36 = arith.constant 0.000000e+00 : f32
      %75 = vector.broadcast %cst_36 : f32 to vector<128x1xf32>
      %76 = arith.subf %75, %74 : vector<128x1xf32>
      %c0_37 = arith.constant 0 : index
      %c0_38 = arith.constant 0 : index
      %77 = vector.load %arg6[%c0_37, %c0_38] : memref<128x1xf32, #tpu.memory_space<vmem>>, vector<128x1xf32>
      %78 = arith.addf %76, %77 : vector<128x1xf32>
      %c0_39 = arith.constant 0 : index
      %c0_40 = arith.constant 0 : index
      %79 = vector.load %arg7[%c0_39, %c0_40] : memref<128x1xf32, #tpu.memory_space<vmem>>, vector<128x1xf32>
      %80 = math.log %79 : vector<128x1xf32>
      %81 = arith.addf %78, %80 : vector<128x1xf32>
      %c16_i32_41 = arith.constant 16 : i32
      %82 = vector.broadcast %c16_i32_41 : i32 to vector<128x1xi32>
      %83 = arith.cmpi slt, %19, %82 : vector<128x1xi32>
      %cst_42 = arith.constant 0.000000e+00 : f32
      %84 = vector.broadcast %cst_42 : f32 to vector<128x1xf32>
      %85 = arith.select %83, %81, %84 : vector<128x1xi1>, vector<128x1xf32>
      %c0_43 = arith.constant 0 : index
      %c0_44 = arith.constant 0 : index
      %86 = vector.load %arg4[%c0_43, %c0_44] : memref<128x1xf32, #tpu.memory_space<vmem>>, vector<128x1xf32>
      tpu.vector_store %arg4[%c0_43, %c0_44], %85 {strides = array<i32>} : memref<128x1xf32, #tpu.memory_space<vmem>>, vector<128x1xf32>,
    } else {
    }
    return
  }
  func.func @transform_0(%arg0: i32, %arg1: i32) -> (i32, i32) {
    %c0_i32 = arith.constant 0 : i32
    %c0_i32_0 = arith.constant 0 : i32
    return %arg0, %c0_i32 : i32, i32
  }
  func.func @transform_1(%arg0: i32, %arg1: i32) -> (i32, i32) {
    %c0_i32 = arith.constant 0 : i32
    %c0_i32_0 = arith.constant 0 : i32
    return %arg1, %c0_i32 : i32, i32
  }
  func.func @transform_2(%arg0: i32, %arg1: i32) -> (i32, i32) {
    %c0_i32 = arith.constant 0 : i32
    %c0_i32_0 = arith.constant 0 : i32
    return %arg0, %c0_i32 : i32, i32
  }
}

</mosaic_0001>

<llo_original>
// kernel: tpu_custom_call.1
$region0: #{tpu_custom_call.1}
  #allocation0 [shape = 'u32[]', space=smem, size = 0x4, offset = 0x4, fixed_abs, tag = 'smem constant byte address 0x4 - core index']
  #allocation1 [shape = 'u32[144,128]{1,0:T(1,128)}', space=vmem, size = 0x12000, scoped, tag = 'internal scratch']
  #allocation2 [shape = 'f32[128,128]{1,0:T(8,128)}', space=vmem, size = 0x10000, scoped, tag = 'scratch operand']
  #allocation3 [shape = 'f32[128,1]{1,0:T(8,128)}', space=vmem, size = 0x10000, scoped, tag = 'scratch operand']
  #allocation4 [shape = 'f32[128,1]{1,0:T(8,128)}', space=vmem, size = 0x10000, scoped, tag = 'scratch operand']
  #allocation5 [shape = 'f32[128,1]{1,0:T(8,128)}', space=vmem, size = 0x10000, scoped, tag = 'scratch operand']
  %s0 = inlined_call_operand.hbm [shape: f32[128,128], index: 0, kind: input, shape index: {}]
  %s1 = inlined_call_operand.hbm [shape: f32[128,128], index: 1, kind: input, shape index: {}]
  %s2 = inlined_call_operand.vmem [shape: f32[128,1], index: 2, kind: output, shape index: {}]
  %s3 = sld [smem:[#allocation0]]
  $region34: #{tpu_custom_call.1} parent=0
    _
  %s5 = ssub.s32 1, %s3
  %s6 = scalar_select 0, %s5, %s3
  $region1: #{tpu_custom_call.1} parent=0
    #allocation6 [shape = 'u8[65536]{0}', space=vmem, size = 0x10000, scoped, tag = 'input window, operand 0, single buffered']
    #allocation7 [shape = 's32[1]{0}', space=sflag, size = 0x4, scoped, tag = 'scoped memory for tpu_custom_call.1']
    #allocation8 [shape = 'u8[65536]{0}', space=vmem, size = 0x10000, scoped, tag = 'input window, operand 1, single buffered']
    #allocation9 [shape = 's32[1]{0}', space=sflag, size = 0x4, scoped, tag = 'scoped memory for tpu_custom_call.1']
    %7 = vsyncpa [#allocation7], 0
    %8 = vsyncpa [#allocation9], 0
    // Predicated region
    $region2: #{tpu_custom_call.1} parent=1 // pred_check
      _
    $region3: #{tpu_custom_call.1} parent=1 // pred_check_branch
      %10 = sbr.rel (0) target = $region5
    $region4: #{tpu_custom_call.1} parent=1 // pred_region
      %s12 = ssub.s32 2048, 2048
      %13 = vsyncadd [#allocation7], %s12
      %s14 = sshll.u32 [#allocation6], 4
      %s15 = int_to_ptr.vmem [resolvable:$true] %s14
      %20 = dma.hbm_to_vmem [thread:$0]  %s0, 2048, %s15, [#allocation7], 128, 128, 8
    $region5: #{tpu_custom_call.1} parent=1 // pred_fallthru
      _
    // Predicated region
    $region6: #{tpu_custom_call.1} parent=1 // pred_check
      _
    $region7: #{tpu_custom_call.1} parent=1 // pred_check_branch
      %22 = sbr.rel (0) target = $region9
    $region8: #{tpu_custom_call.1} parent=1 // pred_region
      %s24 = ssub.s32 2048, 2048
      %25 = vsyncadd [#allocation9], %s24
      %s26 = sshll.u32 [#allocation8], 4
      %s27 = int_to_ptr.vmem [resolvable:$true] %s26
      %32 = dma.hbm_to_vmem [thread:$0]  %s1, 2048, %s27, [#allocation9], 128, 128, 8
    $region9: #{tpu_custom_call.1} parent=1 // pred_fallthru
      _
    // Predicated region
    $region10: #{tpu_custom_call.1} parent=1 // pred_check
      _
    $region11: #{tpu_custom_call.1} parent=1 // pred_check_branch
      %34 = sbr.rel (0) target = $region13
    $region12: #{tpu_custom_call.1} parent=1 // pred_region
      %35 = dma.done [#allocation7], 2048
    $region13: #{tpu_custom_call.1} parent=1 // pred_fallthru
      _
    // Predicated region
    $region14: #{tpu_custom_call.1} parent=1 // pred_check
      _
    $region15: #{tpu_custom_call.1} parent=1 // pred_check_branch
      %37 = sbr.rel (0) target = $region17
    $region16: #{tpu_custom_call.1} parent=1 // pred_region
      %38 = dma.done [#allocation9], 2048
    $region17: #{tpu_custom_call.1} parent=1 // pred_fallthru
      _
    %p39 = scmp.eq.s32.totalorder 0, 0
    // Predicated region
    $region18: #{tpu_custom_call.1} parent=1 // pred_check
      %p40 = pneg %p39
    $region19: #{tpu_custom_call.1} parent=1 // pred_check_branch
      %42 = sbr.rel (%p40) target = $region21
    $region20: #{tpu_custom_call.1} parent=1 // pred_region
      %v43 = vld [vmem:[#allocation6] sm:$0xff]
      %v44 = vld [vmem:[#allocation6 + $0x8] sm:$0xff]
      %v45 = vld [vmem:[#allocation6 + $0x10] sm:$0xff]
      %v46 = vld [vmem:[#allocation6 + $0x18] sm:$0xff]
      %v47 = vld [vmem:[#allocation6 + $0x20] sm:$0xff]
      %v48 = vld [vmem:[#allocation6 + $0x28] sm:$0xff]
      %v49 = vld [vmem:[#allocation6 + $0x30] sm:$0xff]
      %v50 = vld [vmem:[#allocation6 + $0x38] sm:$0xff]
      %v51 = vld [vmem:[#allocation6 + $0x40] sm:$0xff]
      %v52 = vld [vmem:[#allocation6 + $0x48] sm:$0xff]
      %v53 = vld [vmem:[#allocation6 + $0x50] sm:$0xff]
      %v54 = vld [vmem:[#allocation6 + $0x58] sm:$0xff]
      %v55 = vld [vmem:[#allocation6 + $0x60] sm:$0xff]
      %v56 = vld [vmem:[#allocation6 + $0x68] sm:$0xff]
      %v57 = vld [vmem:[#allocation6 + $0x70] sm:$0xff]
      %v58 = vld [vmem:[#allocation6 + $0x78] sm:$0xff]
      %v59 = vmul.f32 %v43, %v43
      %v60 = vmul.f32 %v44, %v44
      %v61 = vmul.f32 %v45, %v45
      %v62 = vmul.f32 %v46, %v46
      %v63 = vmul.f32 %v47, %v47
      %v64 = vmul.f32 %v48, %v48
      %v65 = vmul.f32 %v49, %v49
      %v66 = vmul.f32 %v50, %v50
      %v67 = vmul.f32 %v51, %v51
      %v68 = vmul.f32 %v52, %v52
      %v69 = vmul.f32 %v53, %v53
      %v70 = vmul.f32 %v54, %v54
      %v71 = vmul.f32 %v55, %v55
      %v72 = vmul.f32 %v56, %v56
      %v73 = vmul.f32 %v57, %v57
      %v74 = vmul.f32 %v58, %v58
      %75 = vadd.xlane.f32.xlu0 %v59
      %v76 = vpop.xlane.xlu0 %75
      %77 = vadd.xlane.f32.xlu0 %v60
      %v78 = vpop.xlane.xlu0 %77
      %79 = vadd.xlane.f32.xlu0 %v61
      %v80 = vpop.xlane.xlu0 %79
      %81 = vadd.xlane.f32.xlu0 %v62
      %v82 = vpop.xlane.xlu0 %81
      %83 = vadd.xlane.f32.xlu0 %v63
      %v84 = vpop.xlane.xlu0 %83
      %85 = vadd.xlane.f32.xlu0 %v64
      %v86 = vpop.xlane.xlu0 %85
      %87 = vadd.xlane.f32.xlu0 %v65
      %v88 = vpop.xlane.xlu0 %87
      %89 = vadd.xlane.f32.xlu0 %v66
      %v90 = vpop.xlane.xlu0 %89
      %91 = vadd.xlane.f32.xlu0 %v67
      %v92 = vpop.xlane.xlu0 %91
      %93 = vadd.xlane.f32.xlu0 %v68
      %v94 = vpop.xlane.xlu0 %93
      %95 = vadd.xlane.f32.xlu0 %v69
      %v96 = vpop.xlane.xlu0 %95
      %97 = vadd.xlane.f32.xlu0 %v70
      %v98 = vpop.xlane.xlu0 %97
      %99 = vadd.xlane.f32.xlu0 %v71
      %v100 = vpop.xlane.xlu0 %99
      %101 = vadd.xlane.f32.xlu0 %v72
      %v102 = vpop.xlane.xlu0 %101
      %103 = vadd.xlane.f32.xlu0 %v73
      %v104 = vpop.xlane.xlu0 %103
      %105 = vadd.xlane.f32.xlu0 %v74
      %v106 = vpop.xlane.xlu0 %105
      %v107 = vrsqrt.pop %v76
      %v108 = vmul.f32 %v76, %v107
      %vm109 = vcmp.eq.f32.partialorder %v76, inf
      %v110 = vsel %vm109, %v76, %v108
      %vm111 = vcmp.eq.f32.partialorder %v76, 0.0
      %v112 = vand.u32 %v76, 2147483648
      %v113 = vsel %vm111, %v112, %v110
      %v114 = vrsqrt.pop %v78
      %v115 = vmul.f32 %v78, %v114
      %vm116 = vcmp.eq.f32.partialorder %v78, inf
      %v117 = vsel %vm116, %v78, %v115
      %vm118 = vcmp.eq.f32.partialorder %v78, 0.0
      %v119 = vand.u32 %v78, 2147483648
      %v120 = vsel %vm118, %v119, %v117
      %v121 = vrsqrt.pop %v80
      %v122 = vmul.f32 %v80, %v121
      %vm123 = vcmp.eq.f32.partialorder %v80, inf
      %v124 = vsel %vm123, %v80, %v122
      %vm125 = vcmp.eq.f32.partialorder %v80, 0.0
      %v126 = vand.u32 %v80, 2147483648
      %v127 = vsel %vm125, %v126, %v124
      %v128 = vrsqrt.pop %v82
      %v129 = vmul.f32 %v82, %v128
      %vm130 = vcmp.eq.f32.partialorder %v82, inf
      %v131 = vsel %vm130, %v82, %v129
      %vm132 = vcmp.eq.f32.partialorder %v82, 0.0
      %v133 = vand.u32 %v82, 2147483648
      %v134 = vsel %vm132, %v133, %v131
      %v135 = vrsqrt.pop %v84
      %v136 = vmul.f32 %v84, %v135
      %vm137 = vcmp.eq.f32.partialorder %v84, inf
      %v138 = vsel %vm137, %v84, %v136
      %vm139 = vcmp.eq.f32.partialorder %v84, 0.0
      %v140 = vand.u32 %v84, 2147483648
      %v141 = vsel %vm139, %v140, %v138
      %v142 = vrsqrt.pop %v86
      %v143 = vmul.f32 %v86, %v142
      %vm144 = vcmp.eq.f32.partialorder %v86, inf
      %v145 = vsel %vm144, %v86, %v143
      %vm146 = vcmp.eq.f32.partialorder %v86, 0.0
      %v147 = vand.u32 %v86, 2147483648
      %v148 = vsel %vm146, %v147, %v145
      %v149 = vrsqrt.pop %v88
      %v150 = vmul.f32 %v88, %v149
      %vm151 = vcmp.eq.f32.partialorder %v88, inf
      %v152 = vsel %vm151, %v88, %v150
      %vm153 = vcmp.eq.f32.partialorder %v88, 0.0
      %v154 = vand.u32 %v88, 2147483648
      %v155 = vsel %vm153, %v154, %v152
      %v156 = vrsqrt.pop %v90
      %v157 = vmul.f32 %v90, %v156
      %vm158 = vcmp.eq.f32.partialorder %v90, inf
      %v159 = vsel %vm158, %v90, %v157
      %vm160 = vcmp.eq.f32.partialorder %v90, 0.0
      %v161 = vand.u32 %v90, 2147483648
      %v162 = vsel %vm160, %v161, %v159
      %v163 = vrsqrt.pop %v92
      %v164 = vmul.f32 %v92, %v163
      %vm165 = vcmp.eq.f32.partialorder %v92, inf
      %v166 = vsel %vm165, %v92, %v164
      %vm167 = vcmp.eq.f32.partialorder %v92, 0.0
      %v168 = vand.u32 %v92, 2147483648
      %v169 = vsel %vm167, %v168, %v166
      %v170 = vrsqrt.pop %v94
      %v171 = vmul.f32 %v94, %v170
      %vm172 = vcmp.eq.f32.partialorder %v94, inf
      %v173 = vsel %vm172, %v94, %v171
      %vm174 = vcmp.eq.f32.partialorder %v94, 0.0
      %v175 = vand.u32 %v94, 2147483648
      %v176 = vsel %vm174, %v175, %v173
      %v177 = vrsqrt.pop %v96
      %v178 = vmul.f32 %v96, %v177
      %vm179 = vcmp.eq.f32.partialorder %v96, inf
      %v180 = vsel %vm179, %v96, %v178
      %vm181 = vcmp.eq.f32.partialorder %v96, 0.0
      %v182 = vand.u32 %v96, 2147483648
      %v183 = vsel %vm181, %v182, %v180
      %v184 = vrsqrt.pop %v98
      %v185 = vmul.f32 %v98, %v184
      %vm186 = vcmp.eq.f32.partialorder %v98, inf
      %v187 = vsel %vm186, %v98, %v185
      %vm188 = vcmp.eq.f32.partialorder %v98, 0.0
      %v189 = vand.u32 %v98, 2147483648
      %v190 = vsel %vm188, %v189, %v187
      %v191 = vrsqrt.pop %v100
      %v192 = vmul.f32 %v100, %v191
      %vm193 = vcmp.eq.f32.partialorder %v100, inf
      %v194 = vsel %vm193, %v100, %v192
      %vm195 = vcmp.eq.f32.partialorder %v100, 0.0
      %v196 = vand.u32 %v100, 2147483648
      %v197 = vsel %vm195, %v196, %v194
      %v198 = vrsqrt.pop %v102
      %v199 = vmul.f32 %v102, %v198
      %vm200 = vcmp.eq.f32.partialorder %v102, inf
      %v201 = vsel %vm200, %v102, %v199
      %vm202 = vcmp.eq.f32.partialorder %v102, 0.0
      %v203 = vand.u32 %v102, 2147483648
      %v204 = vsel %vm202, %v203, %v201
      %v205 = vrsqrt.pop %v104
      %v206 = vmul.f32 %v104, %v205
      %vm207 = vcmp.eq.f32.partialorder %v104, inf
      %v208 = vsel %vm207, %v104, %v206
      %vm209 = vcmp.eq.f32.partialorder %v104, 0.0
      %v210 = vand.u32 %v104, 2147483648
      %v211 = vsel %vm209, %v210, %v208
      %v212 = vrsqrt.pop %v106
      %v213 = vmul.f32 %v106, %v212
      %vm214 = vcmp.eq.f32.partialorder %v106, inf
      %v215 = vsel %vm214, %v106, %v213
      %vm216 = vcmp.eq.f32.partialorder %v106, 0.0
      %v217 = vand.u32 %v106, 2147483648
      %v218 = vsel %vm216, %v217, %v215
      %v219 = vmax.f32 %v113, 1e-08
      %v220 = vmax.f32 %v120, 1e-08
      %v221 = vmax.f32 %v127, 1e-08
      %v222 = vmax.f32 %v134, 1e-08
      %v223 = vmax.f32 %v141, 1e-08
      %v224 = vmax.f32 %v148, 1e-08
      %v225 = vmax.f32 %v155, 1e-08
      %v226 = vmax.f32 %v162, 1e-08
      %v227 = vmax.f32 %v169, 1e-08
      %v228 = vmax.f32 %v176, 1e-08
      %v229 = vmax.f32 %v183, 1e-08
      %v230 = vmax.f32 %v190, 1e-08
      %v231 = vmax.f32 %v197, 1e-08
      %v232 = vmax.f32 %v204, 1e-08
      %v233 = vmax.f32 %v211, 1e-08
      %v234 = vmax.f32 %v218, 1e-08
      %v235 = vrcp.pop %v219
      %v236 = vmul.f32 10.0, %v235
      %v237 = vrcp.pop %v220
      %v238 = vmul.f32 10.0, %v237
      %v239 = vrcp.pop %v221
      %v240 = vmul.f32 10.0, %v239
      %v241 = vrcp.pop %v222
      %v242 = vmul.f32 10.0, %v241
      %v243 = vrcp.pop %v223
      %v244 = vmul.f32 10.0, %v243
      %v245 = vrcp.pop %v224
      %v246 = vmul.f32 10.0, %v245
      %v247 = vrcp.pop %v225
      %v248 = vmul.f32 10.0, %v247
      %v249 = vrcp.pop %v226
      %v250 = vmul.f32 10.0, %v249
      %v251 = vrcp.pop %v227
      %v252 = vmul.f32 10.0, %v251
      %v253 = vrcp.pop %v228
      %v254 = vmul.f32 10.0, %v253
      %v255 = vrcp.pop %v229
      %v256 = vmul.f32 10.0, %v255
      %v257 = vrcp.pop %v230
      %v258 = vmul.f32 10.0, %v257
      %v259 = vrcp.pop %v231
      %v260 = vmul.f32 10.0, %v259
      %v261 = vrcp.pop %v232
      %v262 = vmul.f32 10.0, %v261
      %v263 = vrcp.pop %v233
      %v264 = vmul.f32 10.0, %v263
      %v265 = vrcp.pop %v234
      %v266 = vmul.f32 10.0, %v265
      %v267 = vmul.f32 %v43, %v236
      %v268 = vmul.f32 %v44, %v238
      %v269 = vmul.f32 %v45, %v240
      %v270 = vmul.f32 %v46, %v242
      %v271 = vmul.f32 %v47, %v244
      %v272 = vmul.f32 %v48, %v246
      %v273 = vmul.f32 %v49, %v248
      %v274 = vmul.f32 %v50, %v250
      %v275 = vmul.f32 %v51, %v252
      %v276 = vmul.f32 %v52, %v254
      %v277 = vmul.f32 %v53, %v256
      %v278 = vmul.f32 %v54, %v258
      %v279 = vmul.f32 %v55, %v260
      %v280 = vmul.f32 %v56, %v262
      %v281 = vmul.f32 %v57, %v264
      %v282 = vmul.f32 %v58, %v266
      %283 = vst [vmem:[#allocation2] sm:$0xff] %v267
      %284 = vst [vmem:[#allocation2 + $0x8] sm:$0xff] %v268
      %285 = vst [vmem:[#allocation2 + $0x10] sm:$0xff] %v269
      %286 = vst [vmem:[#allocation2 + $0x18] sm:$0xff] %v270
      %287 = vst [vmem:[#allocation2 + $0x20] sm:$0xff] %v271
      %288 = vst [vmem:[#allocation2 + $0x28] sm:$0xff] %v272
      %289 = vst [vmem:[#allocation2 + $0x30] sm:$0xff] %v273
      %290 = vst [vmem:[#allocation2 + $0x38] sm:$0xff] %v274
      %291 = vst [vmem:[#allocation2 + $0x40] sm:$0xff] %v275
      %292 = vst [vmem:[#allocation2 + $0x48] sm:$0xff] %v276
      %293 = vst [vmem:[#allocation2 + $0x50] sm:$0xff] %v277
      %294 = vst [vmem:[#allocation2 + $0x58] sm:$0xff] %v278
      %295 = vst [vmem:[#allocation2 + $0x60] sm:$0xff] %v279
      %296 = vst [vmem:[#allocation2 + $0x68] sm:$0xff] %v280
      %297 = vst [vmem:[#allocation2 + $0x70] sm:$0xff] %v281
      %298 = vst [vmem:[#allocation2 + $0x78] sm:$0xff] %v282
      %vm299 = vcmask 7168
      %300 = vst.msk [vmem:[#allocation3] sm:$0xff] %vm299, -1e+30
      %301 = vst.msk [vmem:[#allocation3 + $0x8] sm:$0xff] %vm299, -1e+30
      %302 = vst.msk [vmem:[#allocation3 + $0x10] sm:$0xff] %vm299, -1e+30
      %303 = vst.msk [vmem:[#allocation3 + $0x18] sm:$0xff] %vm299, -1e+30
      %304 = vst.msk [vmem:[#allocation3 + $0x20] sm:$0xff] %vm299, -1e+30
      %305 = vst.msk [vmem:[#allocation3 + $0x28] sm:$0xff] %vm299, -1e+30
      %306 = vst.msk [vmem:[#allocation3 + $0x30] sm:$0xff] %vm299, -1e+30
      %307 = vst.msk [vmem:[#allocation3 + $0x38] sm:$0xff] %vm299, -1e+30
      %308 = vst.msk [vmem:[#allocation3 + $0x40] sm:$0xff] %vm299, -1e+30
      %309 = vst.msk [vmem:[#allocation3 + $0x48] sm:$0xff] %vm299, -1e+30
      %310 = vst.msk [vmem:[#allocation3 + $0x50] sm:$0xff] %vm299, -1e+30
      %311 = vst.msk [vmem:[#allocation3 + $0x58] sm:$0xff] %vm299, -1e+30
      %312 = vst.msk [vmem:[#allocation3 + $0x60] sm:$0xff] %vm299, -1e+30
      %313 = vst.msk [vmem:[#allocation3 + $0x68] sm:$0xff] %vm299, -1e+30
      %314 = vst.msk [vmem:[#allocation3 + $0x70] sm:$0xff] %vm299, -1e+30
      %315 = vst.msk [vmem:[#allocation3 + $0x78] sm:$0xff] %vm299, -1e+30
      %316 = vst.msk [vmem:[#allocation4] sm:$0xff] %vm299, 0.0
      %317 = vst.msk [vmem:[#allocation4 + $0x8] sm:$0xff] %vm299, 0.0
      %318 = vst.msk [vmem:[#allocation4 + $0x10] sm:$0xff] %vm299, 0.0
      %319 = vst.msk [vmem:[#allocation4 + $0x18] sm:$0xff] %vm299, 0.0
      %320 = vst.msk [vmem:[#allocation4 + $0x20] sm:$0xff] %vm299, 0.0
      %321 = vst.msk [vmem:[#allocation4 + $0x28] sm:$0xff] %vm299, 0.0
      %322 = vst.msk [vmem:[#allocation4 + $0x30] sm:$0xff] %vm299, 0.0
      %323 = vst.msk [vmem:[#allocation4 + $0x38] sm:$0xff] %vm299, 0.0
      %324 = vst.msk [vmem:[#allocation4 + $0x40] sm:$0xff] %vm299, 0.0
      %325 = vst.msk [vmem:[#allocation4 + $0x48] sm:$0xff] %vm299, 0.0
      %326 = vst.msk [vmem:[#allocation4 + $0x50] sm:$0xff] %vm299, 0.0
      %327 = vst.msk [vmem:[#allocation4 + $0x58] sm:$0xff] %vm299, 0.0
      %328 = vst.msk [vmem:[#allocation4 + $0x60] sm:$0xff] %vm299, 0.0
      %329 = vst.msk [vmem:[#allocation4 + $0x68] sm:$0xff] %vm299, 0.0
      %330 = vst.msk [vmem:[#allocation4 + $0x70] sm:$0xff] %vm299, 0.0
      %331 = vst.msk [vmem:[#allocation4 + $0x78] sm:$0xff] %vm299, 0.0
      %332 = vst.msk [vmem:[#allocation5] sm:$0xff] %vm299, 0.0
      %333 = vst.msk [vmem:[#allocation5 + $0x8] sm:$0xff] %vm299, 0.0
      %334 = vst.msk [vmem:[#allocation5 + $0x10] sm:$0xff] %vm299, 0.0
      %335 = vst.msk [vmem:[#allocation5 + $0x18] sm:$0xff] %vm299, 0.0
      %336 = vst.msk [vmem:[#allocation5 + $0x20] sm:$0xff] %vm299, 0.0
      %337 = vst.msk [vmem:[#allocation5 + $0x28] sm:$0xff] %vm299, 0.0
      %338 = vst.msk [vmem:[#allocation5 + $0x30] sm:$0xff] %vm299, 0.0
      %339 = vst.msk [vmem:[#allocation5 + $0x38] sm:$0xff] %vm299, 0.0
      %340 = vst.msk [vmem:[#allocation5 + $0x40] sm:$0xff] %vm299, 0.0
      %341 = vst.msk [vmem:[#allocation5 + $0x48] sm:$0xff] %vm299, 0.0
      %342 = vst.msk [vmem:[#allocation5 + $0x50] sm:$0xff] %vm299, 0.0
      %343 = vst.msk [vmem:[#allocation5 + $0x58] sm:$0xff] %vm299, 0.0
      %344 = vst.msk [vmem:[#allocation5 + $0x60] sm:$0xff] %vm299, 0.0
      %345 = vst.msk [vmem:[#allocation5 + $0x68] sm:$0xff] %vm299, 0.0
      %346 = vst.msk [vmem:[#allocation5 + $0x70] sm:$0xff] %vm299, 0.0
      %347 = vst.msk [vmem:[#allocation5 + $0x78] sm:$0xff] %vm299, 0.0
    $region21: #{tpu_custom_call.1} parent=1 // pred_fallthru
      _
    %v348 = vld [vmem:[#allocation8] sm:$0xff]
    %v349 = vld [vmem:[#allocation8 + $0x8] sm:$0xff]
    %v350 = vld [vmem:[#allocation8 + $0x10] sm:$0xff]
    %v351 = vld [vmem:[#allocation8 + $0x18] sm:$0xff]
    %v352 = vld [vmem:[#allocation8 + $0x20] sm:$0xff]
    %v353 = vld [vmem:[#allocation8 + $0x28] sm:$0xff]
    %v354 = vld [vmem:[#allocation8 + $0x30] sm:$0xff]
    %v355 = vld [vmem:[#allocation8 + $0x38] sm:$0xff]
    %v356 = vld [vmem:[#allocation8 + $0x40] sm:$0xff]
    %v357 = vld [vmem:[#allocation8 + $0x48] sm:$0xff]
    %v358 = vld [vmem:[#allocation8 + $0x50] sm:$0xff]
    %v359 = vld [vmem:[#allocation8 + $0x58] sm:$0xff]
    %v360 = vld [vmem:[#allocation8 + $0x60] sm:$0xff]
    %v361 = vld [vmem:[#allocation8 + $0x68] sm:$0xff]
    %v362 = vld [vmem:[#allocation8 + $0x70] sm:$0xff]
    %v363 = vld [vmem:[#allocation8 + $0x78] sm:$0xff]
    %v364 = vmul.f32 %v348, %v348
    %v365 = vmul.f32 %v349, %v349
    %v366 = vmul.f32 %v350, %v350
    %v367 = vmul.f32 %v351, %v351
    %v368 = vmul.f32 %v352, %v352
    %v369 = vmul.f32 %v353, %v353
    %v370 = vmul.f32 %v354, %v354
    %v371 = vmul.f32 %v355, %v355
    %v372 = vmul.f32 %v356, %v356
    %v373 = vmul.f32 %v357, %v357
    %v374 = vmul.f32 %v358, %v358
    %v375 = vmul.f32 %v359, %v359
    %v376 = vmul.f32 %v360, %v360
    %v377 = vmul.f32 %v361, %v361
    %v378 = vmul.f32 %v362, %v362
    %v379 = vmul.f32 %v363, %v363
    %380 = vadd.xlane.f32.xlu0 %v364
    %v381 = vpop.xlane.xlu0 %380
    %382 = vadd.xlane.f32.xlu0 %v365
    %v383 = vpop.xlane.xlu0 %382
    %384 = vadd.xlane.f32.xlu0 %v366
    %v385 = vpop.xlane.xlu0 %384
    %386 = vadd.xlane.f32.xlu0 %v367
    %v387 = vpop.xlane.xlu0 %386
    %388 = vadd.xlane.f32.xlu0 %v368
    %v389 = vpop.xlane.xlu0 %388
    %390 = vadd.xlane.f32.xlu0 %v369
    %v391 = vpop.xlane.xlu0 %390
    %392 = vadd.xlane.f32.xlu0 %v370
    %v393 = vpop.xlane.xlu0 %392
    %394 = vadd.xlane.f32.xlu0 %v371
    %v395 = vpop.xlane.xlu0 %394
    %396 = vadd.xlane.f32.xlu0 %v372
    %v397 = vpop.xlane.xlu0 %396
    %398 = vadd.xlane.f32.xlu0 %v373
    %v399 = vpop.xlane.xlu0 %398
    %400 = vadd.xlane.f32.xlu0 %v374
    %v401 = vpop.xlane.xlu0 %400
    %402 = vadd.xlane.f32.xlu0 %v375
    %v403 = vpop.xlane.xlu0 %402
    %404 = vadd.xlane.f32.xlu0 %v376
    %v405 = vpop.xlane.xlu0 %404
    %406 = vadd.xlane.f32.xlu0 %v377
    %v407 = vpop.xlane.xlu0 %406
    %408 = vadd.xlane.f32.xlu0 %v378
    %v409 = vpop.xlane.xlu0 %408
    %410 = vadd.xlane.f32.xlu0 %v379
    %v411 = vpop.xlane.xlu0 %410
    %v412 = vrsqrt.pop %v381
    %v413 = vmul.f32 %v381, %v412
    %vm414 = vcmp.eq.f32.partialorder %v381, inf
    %v415 = vsel %vm414, %v381, %v413
    %vm416 = vcmp.eq.f32.partialorder %v381, 0.0
    %v417 = vand.u32 %v381, 2147483648
    %v418 = vsel %vm416, %v417, %v415
    %v419 = vrsqrt.pop %v383
    %v420 = vmul.f32 %v383, %v419
    %vm421 = vcmp.eq.f32.partialorder %v383, inf
    %v422 = vsel %vm421, %v383, %v420
    %vm423 = vcmp.eq.f32.partialorder %v383, 0.0
    %v424 = vand.u32 %v383, 2147483648
    %v425 = vsel %vm423, %v424, %v422
    %v426 = vrsqrt.pop %v385
    %v427 = vmul.f32 %v385, %v426
    %vm428 = vcmp.eq.f32.partialorder %v385, inf
    %v429 = vsel %vm428, %v385, %v427
    %vm430 = vcmp.eq.f32.partialorder %v385, 0.0
    %v431 = vand.u32 %v385, 2147483648
    %v432 = vsel %vm430, %v431, %v429
    %v433 = vrsqrt.pop %v387
    %v434 = vmul.f32 %v387, %v433
    %vm435 = vcmp.eq.f32.partialorder %v387, inf
    %v436 = vsel %vm435, %v387, %v434
    %vm437 = vcmp.eq.f32.partialorder %v387, 0.0
    %v438 = vand.u32 %v387, 2147483648
    %v439 = vsel %vm437, %v438, %v436
    %v440 = vrsqrt.pop %v389
    %v441 = vmul.f32 %v389, %v440
    %vm442 = vcmp.eq.f32.partialorder %v389, inf
    %v443 = vsel %vm442, %v389, %v441
    %vm444 = vcmp.eq.f32.partialorder %v389, 0.0
    %v445 = vand.u32 %v389, 2147483648
    %v446 = vsel %vm444, %v445, %v443
    %v447 = vrsqrt.pop %v391
    %v448 = vmul.f32 %v391, %v447
    %vm449 = vcmp.eq.f32.partialorder %v391, inf
    %v450 = vsel %vm449, %v391, %v448
    %vm451 = vcmp.eq.f32.partialorder %v391, 0.0
    %v452 = vand.u32 %v391, 2147483648
    %v453 = vsel %vm451, %v452, %v450
    %v454 = vrsqrt.pop %v393
    %v455 = vmul.f32 %v393, %v454
    %vm456 = vcmp.eq.f32.partialorder %v393, inf
    %v457 = vsel %vm456, %v393, %v455
    %vm458 = vcmp.eq.f32.partialorder %v393, 0.0
    %v459 = vand.u32 %v393, 2147483648
    %v460 = vsel %vm458, %v459, %v457
    %v461 = vrsqrt.pop %v395
    %v462 = vmul.f32 %v395, %v461
    %vm463 = vcmp.eq.f32.partialorder %v395, inf
    %v464 = vsel %vm463, %v395, %v462
    %vm465 = vcmp.eq.f32.partialorder %v395, 0.0
    %v466 = vand.u32 %v395, 2147483648
    %v467 = vsel %vm465, %v466, %v464
    %v468 = vrsqrt.pop %v397
    %v469 = vmul.f32 %v397, %v468
    %vm470 = vcmp.eq.f32.partialorder %v397, inf
    %v471 = vsel %vm470, %v397, %v469
    %vm472 = vcmp.eq.f32.partialorder %v397, 0.0
    %v473 = vand.u32 %v397, 2147483648
    %v474 = vsel %vm472, %v473, %v471
    %v475 = vrsqrt.pop %v399
    %v476 = vmul.f32 %v399, %v475
    %vm477 = vcmp.eq.f32.partialorder %v399, inf
    %v478 = vsel %vm477, %v399, %v476
    %vm479 = vcmp.eq.f32.partialorder %v399, 0.0
    %v480 = vand.u32 %v399, 2147483648
    %v481 = vsel %vm479, %v480, %v478
    %v482 = vrsqrt.pop %v401
    %v483 = vmul.f32 %v401, %v482
    %vm484 = vcmp.eq.f32.partialorder %v401, inf
    %v485 = vsel %vm484, %v401, %v483
    %vm486 = vcmp.eq.f32.partialorder %v401, 0.0
    %v487 = vand.u32 %v401, 2147483648
    %v488 = vsel %vm486, %v487, %v485
    %v489 = vrsqrt.pop %v403
    %v490 = vmul.f32 %v403, %v489
    %vm491 = vcmp.eq.f32.partialorder %v403, inf
    %v492 = vsel %vm491, %v403, %v490
    %vm493 = vcmp.eq.f32.partialorder %v403, 0.0
    %v494 = vand.u32 %v403, 2147483648
    %v495 = vsel %vm493, %v494, %v492
    %v496 = vrsqrt.pop %v405
    %v497 = vmul.f32 %v405, %v496
    %vm498 = vcmp.eq.f32.partialorder %v405, inf
    %v499 = vsel %vm498, %v405, %v497
    %vm500 = vcmp.eq.f32.partialorder %v405, 0.0
    %v501 = vand.u32 %v405, 2147483648
    %v502 = vsel %vm500, %v501, %v499
    %v503 = vrsqrt.pop %v407
    %v504 = vmul.f32 %v407, %v503
    %vm505 = vcmp.eq.f32.partialorder %v407, inf
    %v506 = vsel %vm505, %v407, %v504
    %vm507 = vcmp.eq.f32.partialorder %v407, 0.0
    %v508 = vand.u32 %v407, 2147483648
    %v509 = vsel %vm507, %v508, %v506
    %v510 = vrsqrt.pop %v409
    %v511 = vmul.f32 %v409, %v510
    %vm512 = vcmp.eq.f32.partialorder %v409, inf
    %v513 = vsel %vm512, %v409, %v511
    %vm514 = vcmp.eq.f32.partialorder %v409, 0.0
    %v515 = vand.u32 %v409, 2147483648
    %v516 = vsel %vm514, %v515, %v513
    %v517 = vrsqrt.pop %v411
    %v518 = vmul.f32 %v411, %v517
    %vm519 = vcmp.eq.f32.partialorder %v411, inf
    %v520 = vsel %vm519, %v411, %v518
    %vm521 = vcmp.eq.f32.partialorder %v411, 0.0
    %v522 = vand.u32 %v411, 2147483648
    %v523 = vsel %vm521, %v522, %v520
    %v524 = vmax.f32 %v418, 1e-08
    %v525 = vmax.f32 %v425, 1e-08
    %v526 = vmax.f32 %v432, 1e-08
    %v527 = vmax.f32 %v439, 1e-08
    %v528 = vmax.f32 %v446, 1e-08
    %v529 = vmax.f32 %v453, 1e-08
    %v530 = vmax.f32 %v460, 1e-08
    %v531 = vmax.f32 %v467, 1e-08
    %v532 = vmax.f32 %v474, 1e-08
    %v533 = vmax.f32 %v481, 1e-08
    %v534 = vmax.f32 %v488, 1e-08
    %v535 = vmax.f32 %v495, 1e-08
    %v536 = vmax.f32 %v502, 1e-08
    %v537 = vmax.f32 %v509, 1e-08
    %v538 = vmax.f32 %v516, 1e-08
    %v539 = vmax.f32 %v523, 1e-08
    %v540 = vrcp.pop %v524
    %v541 = vmul.f32 1.0, %v540
    %v542 = vrcp.pop %v525
    %v543 = vmul.f32 1.0, %v542
    %v544 = vrcp.pop %v526
    %v545 = vmul.f32 1.0, %v544
    %v546 = vrcp.pop %v527
    %v547 = vmul.f32 1.0, %v546
    %v548 = vrcp.pop %v528
    %v549 = vmul.f32 1.0, %v548
    %v550 = vrcp.pop %v529
    %v551 = vmul.f32 1.0, %v550
    %v552 = vrcp.pop %v530
    %v553 = vmul.f32 1.0, %v552
    %v554 = vrcp.pop %v531
    %v555 = vmul.f32 1.0, %v554
    %v556 = vrcp.pop %v532
    %v557 = vmul.f32 1.0, %v556
    %v558 = vrcp.pop %v533
    %v559 = vmul.f32 1.0, %v558
    %v560 = vrcp.pop %v534
    %v561 = vmul.f32 1.0, %v560
    %v562 = vrcp.pop %v535
    %v563 = vmul.f32 1.0, %v562
    %v564 = vrcp.pop %v536
    %v565 = vmul.f32 1.0, %v564
    %v566 = vrcp.pop %v537
    %v567 = vmul.f32 1.0, %v566
    %v568 = vrcp.pop %v538
    %v569 = vmul.f32 1.0, %v568
    %v570 = vrcp.pop %v539
    %v571 = vmul.f32 1.0, %v570
    %v572 = vmul.f32 %v348, %v541
    %v573 = vmul.f32 %v349, %v543
    %v574 = vmul.f32 %v350, %v545
    %v575 = vmul.f32 %v351, %v547
    %v576 = vmul.f32 %v352, %v549
    %v577 = vmul.f32 %v353, %v551
    %v578 = vmul.f32 %v354, %v553
    %v579 = vmul.f32 %v355, %v555
    %v580 = vmul.f32 %v356, %v557
    %v581 = vmul.f32 %v357, %v559
    %v582 = vmul.f32 %v358, %v561
    %v583 = vmul.f32 %v359, %v563
    %v584 = vmul.f32 %v360, %v565
    %v585 = vmul.f32 %v361, %v567
    %v586 = vmul.f32 %v362, %v569
    %v587 = vmul.f32 %v363, %v571
    %v588 = vld [vmem:[#allocation2] sm:$0xff]
    %v589 = vld [vmem:[#allocation2 + $0x8] sm:$0xff]
    %v590 = vld [vmem:[#allocation2 + $0x10] sm:$0xff]
    %v591 = vld [vmem:[#allocation2 + $0x18] sm:$0xff]
    %v592 = vld [vmem:[#allocation2 + $0x20] sm:$0xff]
    %v593 = vld [vmem:[#allocation2 + $0x28] sm:$0xff]
    %v594 = vld [vmem:[#allocation2 + $0x30] sm:$0xff]
    %v595 = vld [vmem:[#allocation2 + $0x38] sm:$0xff]
    %v596 = vld [vmem:[#allocation2 + $0x40] sm:$0xff]
    %v597 = vld [vmem:[#allocation2 + $0x48] sm:$0xff]
    %v598 = vld [vmem:[#allocation2 + $0x50] sm:$0xff]
    %v599 = vld [vmem:[#allocation2 + $0x58] sm:$0xff]
    %v600 = vld [vmem:[#allocation2 + $0x60] sm:$0xff]
    %v601 = vld [vmem:[#allocation2 + $0x68] sm:$0xff]
    %v602 = vld [vmem:[#allocation2 + $0x70] sm:$0xff]
    %v603 = vld [vmem:[#allocation2 + $0x78] sm:$0xff]
    %604 = vmatprep.subr.mxu0 0.0
    %605 = vmatpush1.xpose.msra.mxu0 %v587
    %606 = vmatprep.subr.mxu0 0.0
    %607 = vmatpush1.xpose.msra.mxu0 %v586
    %608 = vmatprep.subr.mxu0 0.0
    %609 = vmatpush1.xpose.msra.mxu0 %v585
    %610 = vmatprep.subr.mxu0 0.0
    %611 = vmatpush1.xpose.msra.mxu0 %v584
    %612 = vmatprep.subr.mxu0 0.0
    %613 = vmatpush1.xpose.msra.mxu0 %v583
    %614 = vmatprep.subr.mxu0 0.0
    %615 = vmatpush1.xpose.msra.mxu0 %v582
    %616 = vmatprep.subr.mxu0 0.0
    %617 = vmatpush1.xpose.msra.mxu0 %v581
    %618 = vmatprep.subr.mxu0 0.0
    %619 = vmatpush1.xpose.msra.mxu0 %v580
    %620 = vmatprep.subr.mxu0 0.0
    %621 = vmatpush1.xpose.msra.mxu0 %v579
    %622 = vmatprep.subr.mxu0 0.0
    %623 = vmatpush1.xpose.msra.mxu0 %v578
    %624 = vmatprep.subr.mxu0 0.0
    %625 = vmatpush1.xpose.msra.mxu0 %v577
    %626 = vmatprep.subr.mxu0 0.0
    %627 = vmatpush1.xpose.msra.mxu0 %v576
    %628 = vmatprep.subr.mxu0 0.0
    %629 = vmatpush1.xpose.msra.mxu0 %v575
    %630 = vmatprep.subr.mxu0 0.0
    %631 = vmatpush1.xpose.msra.mxu0 %v574
    %632 = vmatprep.subr.mxu0 0.0
    %633 = vmatpush1.xpose.msra.mxu0 %v573
    %634 = vmatprep.subr.mxu0 0.0
    %635 = vmatpush1.xpose.msra.mxu0 %v572
    %636 = vmatprep.subr.mxu0 0.0
    %637 = vmatpush2.xpose.msra.mxu0 0.0
    %638 = vmatprep.subr.mxu0 0.0
    %639 = vmatpush2.xpose.msra.mxu0 0.0
    %640 = vmatprep.subr.mxu0 0.0
    %641 = vmatpush2.xpose.msra.mxu0 0.0
    %642 = vmatprep.subr.mxu0 0.0
    %643 = vmatpush2.xpose.msra.mxu0 0.0
    %644 = vmatprep.subr.mxu0 0.0
    %645 = vmatpush2.xpose.msra.mxu0 0.0
    %646 = vmatprep.subr.mxu0 0.0
    %647 = vmatpush2.xpose.msra.mxu0 0.0
    %648 = vmatprep.subr.mxu0 0.0
    %649 = vmatpush2.xpose.msra.mxu0 0.0
    %650 = vmatprep.subr.mxu0 0.0
    %651 = vmatpush2.xpose.msra.mxu0 0.0
    %652 = vmatprep.subr.mxu0 0.0
    %653 = vmatpush2.xpose.msra.mxu0 0.0
    %654 = vmatprep.subr.mxu0 0.0
    %655 = vmatpush2.xpose.msra.mxu0 0.0
    %656 = vmatprep.subr.mxu0 0.0
    %657 = vmatpush2.xpose.msra.mxu0 0.0
    %658 = vmatprep.subr.mxu0 0.0
    %659 = vmatpush2.xpose.msra.mxu0 0.0
    %660 = vmatprep.subr.mxu0 0.0
    %661 = vmatpush2.xpose.msra.mxu0 0.0
    %662 = vmatprep.subr.mxu0 0.0
    %663 = vmatpush2.xpose.msra.mxu0 0.0
    %664 = vmatprep.subr.mxu0 0.0
    %665 = vmatpush2.xpose.msra.mxu0 0.0
    %666 = vmatprep.subr.mxu0 0.0
    %667 = vmatpush2.xpose.msra.mxu0 0.0
    %668 = vmatprep.mubr.f32.mxu0 0.0
    %669 = vmatmul.mubr.f32.gmra.mxu0 %v588
    %v670 = vpop.f32.mrf.mxu0
    %v671 = vadd.f32 0.0, %v670
    %v672 = vpop.f32.mrf.mxu0
    %673 = vmatprep.mubr.f32.mxu0 0.0
    %674 = vmatmul.mubr.f32.gmra.mxu0 %v589
    %v675 = vpop.f32.mrf.mxu0
    %v676 = vadd.f32 0.0, %v675
    %v677 = vpop.f32.mrf.mxu0
    %678 = vmatprep.mubr.f32.mxu0 0.0
    %679 = vmatmul.mubr.f32.gmra.mxu0 %v590
    %v680 = vpop.f32.mrf.mxu0
    %v681 = vadd.f32 0.0, %v680
    %v682 = vpop.f32.mrf.mxu0
    %683 = vmatprep.mubr.f32.mxu0 0.0
    %684 = vmatmul.mubr.f32.gmra.mxu0 %v591
    %v685 = vpop.f32.mrf.mxu0
    %v686 = vadd.f32 0.0, %v685
    %v687 = vpop.f32.mrf.mxu0
    %688 = vmatprep.mubr.f32.mxu0 0.0
    %689 = vmatmul.mubr.f32.gmra.mxu0 %v592
    %v690 = vpop.f32.mrf.mxu0
    %v691 = vadd.f32 0.0, %v690
    %v692 = vpop.f32.mrf.mxu0
    %693 = vmatprep.mubr.f32.mxu0 0.0
    %694 = vmatmul.mubr.f32.gmra.mxu0 %v593
    %v695 = vpop.f32.mrf.mxu0
    %v696 = vadd.f32 0.0, %v695
    %v697 = vpop.f32.mrf.mxu0
    %698 = vmatprep.mubr.f32.mxu0 0.0
    %699 = vmatmul.mubr.f32.gmra.mxu0 %v594
    %v700 = vpop.f32.mrf.mxu0
    %v701 = vadd.f32 0.0, %v700
    %v702 = vpop.f32.mrf.mxu0
    %703 = vmatprep.mubr.f32.mxu0 0.0
    %704 = vmatmul.mubr.f32.gmra.mxu0 %v595
    %v705 = vpop.f32.mrf.mxu0
    %v706 = vadd.f32 0.0, %v705
    %v707 = vpop.f32.mrf.mxu0
    %708 = vmatprep.mubr.f32.mxu0 0.0
    %709 = vmatmul.mubr.f32.gmra.mxu0 %v596
    %v710 = vpop.f32.mrf.mxu0
    %v711 = vadd.f32 0.0, %v710
    %v712 = vpop.f32.mrf.mxu0
    %713 = vmatprep.mubr.f32.mxu0 0.0
    %714 = vmatmul.mubr.f32.gmra.mxu0 %v597
    %v715 = vpop.f32.mrf.mxu0
    %v716 = vadd.f32 0.0, %v715
    %v717 = vpop.f32.mrf.mxu0
    %718 = vmatprep.mubr.f32.mxu0 0.0
    %719 = vmatmul.mubr.f32.gmra.mxu0 %v598
    %v720 = vpop.f32.mrf.mxu0
    %v721 = vadd.f32 0.0, %v720
    %v722 = vpop.f32.mrf.mxu0
    %723 = vmatprep.mubr.f32.mxu0 0.0
    %724 = vmatmul.mubr.f32.gmra.mxu0 %v599
    %v725 = vpop.f32.mrf.mxu0
    %v726 = vadd.f32 0.0, %v725
    %v727 = vpop.f32.mrf.mxu0
    %728 = vmatprep.mubr.f32.mxu0 0.0
    %729 = vmatmul.mubr.f32.gmra.mxu0 %v600
    %v730 = vpop.f32.mrf.mxu0
    %v731 = vadd.f32 0.0, %v730
    %v732 = vpop.f32.mrf.mxu0
    %733 = vmatprep.mubr.f32.mxu0 0.0
    %734 = vmatmul.mubr.f32.gmra.mxu0 %v601
    %v735 = vpop.f32.mrf.mxu0
    %v736 = vadd.f32 0.0, %v735
    %v737 = vpop.f32.mrf.mxu0
    %738 = vmatprep.mubr.f32.mxu0 0.0
    %739 = vmatmul.mubr.f32.gmra.mxu0 %v602
    %v740 = vpop.f32.mrf.mxu0
    %v741 = vadd.f32 0.0, %v740
    %v742 = vpop.f32.mrf.mxu0
    %743 = vmatprep.mubr.f32.mxu0 0.0
    %744 = vmatmul.mubr.f32.gmra.mxu0 %v603
    %v745 = vpop.f32.mrf.mxu0
    %v746 = vadd.f32 0.0, %v745
    %v747 = vpop.f32.mrf.mxu0
    %748 = vdwg.mxu0
    %s749 = smul.u32 0, 128
    %v750 = vlaneseq
    %v751 = vshrl.u32 %v750, 7
    %v752 = vadd.s32 %v751, 8
    %v753 = vadd.s32 %v751, 16
    %v754 = vadd.s32 %v751, 24
    %v755 = vadd.s32 %v751, 32
    %v756 = vadd.s32 %v751, 40
    %v757 = vadd.s32 %v751, 48
    %v758 = vadd.s32 %v751, 56
    %v759 = vadd.s32 %v751, 64
    %v760 = vadd.s32 %v751, 72
    %v761 = vadd.s32 %v751, 80
    %v762 = vadd.s32 %v751, 88
    %v763 = vadd.s32 %v751, 96
    %v764 = vadd.s32 %v751, 104
    %v765 = vadd.s32 %v751, 112
    %v766 = vadd.s32 %v751, 120
    %v767 = vstv %s749
    %v768 = vadd.s32 %v767, %v751
    %v769 = vadd.s32 %v767, %v752
    %v770 = vadd.s32 %v767, %v753
    %v771 = vadd.s32 %v767, %v754
    %v772 = vadd.s32 %v767, %v755
    %v773 = vadd.s32 %v767, %v756
    %v774 = vadd.s32 %v767, %v757
    %v775 = vadd.s32 %v767, %v758
    %v776 = vadd.s32 %v767, %v759
    %v777 = vadd.s32 %v767, %v760
    %v778 = vadd.s32 %v767, %v761
    %v779 = vadd.s32 %v767, %v762
    %v780 = vadd.s32 %v767, %v763
    %v781 = vadd.s32 %v767, %v764
    %v782 = vadd.s32 %v767, %v765
    %v783 = vadd.s32 %v767, %v766
    %s784 = smul.u32 0, 128
    %v785 = vlaneseq
    %v786 = vand.u32 %v785, 127
    %v787 = vstv %s784
    %v788 = vadd.s32 %v787, %v786
    %vm789 = vcmp.lt.s32.totalorder %v788, 16
    %vm790 = vcmp.eq.s32.totalorder %v788, %v768
    %vm791 = vcmp.eq.s32.totalorder %v788, %v769
    %vm792 = vcmp.eq.s32.totalorder %v788, %v770
    %vm793 = vcmp.eq.s32.totalorder %v788, %v771
    %vm794 = vcmp.eq.s32.totalorder %v788, %v772
    %vm795 = vcmp.eq.s32.totalorder %v788, %v773
    %vm796 = vcmp.eq.s32.totalorder %v788, %v774
    %vm797 = vcmp.eq.s32.totalorder %v788, %v775
    %vm798 = vcmp.eq.s32.totalorder %v788, %v776
    %vm799 = vcmp.eq.s32.totalorder %v788, %v777
    %vm800 = vcmp.eq.s32.totalorder %v788, %v778
    %vm801 = vcmp.eq.s32.totalorder %v788, %v779
    %vm802 = vcmp.eq.s32.totalorder %v788, %v780
    %vm803 = vcmp.eq.s32.totalorder %v788, %v781
    %vm804 = vcmp.eq.s32.totalorder %v788, %v782
    %vm805 = vcmp.eq.s32.totalorder %v788, %v783
    %v806 = vadd.s32 %v768, 8
    %v807 = vadd.s32 %v769, 8
    %v808 = vadd.s32 %v770, 8
    %v809 = vadd.s32 %v771, 8
    %v810 = vadd.s32 %v772, 8
    %v811 = vadd.s32 %v773, 8
    %v812 = vadd.s32 %v774, 8
    %v813 = vadd.s32 %v775, 8
    %v814 = vadd.s32 %v776, 8
    %v815 = vadd.s32 %v777, 8
    %v816 = vadd.s32 %v778, 8
    %v817 = vadd.s32 %v779, 8
    %v818 = vadd.s32 %v780, 8
    %v819 = vadd.s32 %v781, 8
    %v820 = vadd.s32 %v782, 8
    %v821 = vadd.s32 %v783, 8
    %vm822 = vcmp.eq.s32.totalorder %v788, %v806
    %vm823 = vcmp.eq.s32.totalorder %v788, %v807
    %vm824 = vcmp.eq.s32.totalorder %v788, %v808
    %vm825 = vcmp.eq.s32.totalorder %v788, %v809
    %vm826 = vcmp.eq.s32.totalorder %v788, %v810
    %vm827 = vcmp.eq.s32.totalorder %v788, %v811
    %vm828 = vcmp.eq.s32.totalorder %v788, %v812
    %vm829 = vcmp.eq.s32.totalorder %v788, %v813
    %vm830 = vcmp.eq.s32.totalorder %v788, %v814
    %vm831 = vcmp.eq.s32.totalorder %v788, %v815
    %vm832 = vcmp.eq.s32.totalorder %v788, %v816
    %vm833 = vcmp.eq.s32.totalorder %v788, %v817
    %vm834 = vcmp.eq.s32.totalorder %v788, %v818
    %vm835 = vcmp.eq.s32.totalorder %v788, %v819
    %vm836 = vcmp.eq.s32.totalorder %v788, %v820
    %vm837 = vcmp.eq.s32.totalorder %v788, %v821
    %v838 = vsub.s32 %v768, 8
    %v839 = vsub.s32 %v769, 8
    %v840 = vsub.s32 %v770, 8
    %v841 = vsub.s32 %v771, 8
    %v842 = vsub.s32 %v772, 8
    %v843 = vsub.s32 %v773, 8
    %v844 = vsub.s32 %v774, 8
    %v845 = vsub.s32 %v775, 8
    %v846 = vsub.s32 %v776, 8
    %v847 = vsub.s32 %v777, 8
    %v848 = vsub.s32 %v778, 8
    %v849 = vsub.s32 %v779, 8
    %v850 = vsub.s32 %v780, 8
    %v851 = vsub.s32 %v781, 8
    %v852 = vsub.s32 %v782, 8
    %v853 = vsub.s32 %v783, 8
    %vm854 = vcmp.eq.s32.totalorder %v788, %v838
    %vm855 = vcmp.eq.s32.totalorder %v788, %v839
    %vm856 = vcmp.eq.s32.totalorder %v788, %v840
    %vm857 = vcmp.eq.s32.totalorder %v788, %v841
    %vm858 = vcmp.eq.s32.totalorder %v788, %v842
    %vm859 = vcmp.eq.s32.totalorder %v788, %v843
    %vm860 = vcmp.eq.s32.totalorder %v788, %v844
    %vm861 = vcmp.eq.s32.totalorder %v788, %v845
    %vm862 = vcmp.eq.s32.totalorder %v788, %v846
    %vm863 = vcmp.eq.s32.totalorder %v788, %v847
    %vm864 = vcmp.eq.s32.totalorder %v788, %v848
    %vm865 = vcmp.eq.s32.totalorder %v788, %v849
    %vm866 = vcmp.eq.s32.totalorder %v788, %v850
    %vm867 = vcmp.eq.s32.totalorder %v788, %v851
    %vm868 = vcmp.eq.s32.totalorder %v788, %v852
    %vm869 = vcmp.eq.s32.totalorder %v788, %v853
    %vm870 = vmor %vm822, %vm854
    %vm871 = vmor %vm823, %vm855
    %vm872 = vmor %vm824, %vm856
    %vm873 = vmor %vm825, %vm857
    %vm874 = vmor %vm826, %vm858
    %vm875 = vmor %vm827, %vm859
    %vm876 = vmor %vm828, %vm860
    %vm877 = vmor %vm829, %vm861
    %vm878 = vmor %vm830, %vm862
    %vm879 = vmor %vm831, %vm863
    %vm880 = vmor %vm832, %vm864
    %vm881 = vmor %vm833, %vm865
    %vm882 = vmor %vm834, %vm866
    %vm883 = vmor %vm835, %vm867
    %vm884 = vmor %vm836, %vm868
    %vm885 = vmor %vm837, %vm869
    %v886 = vld [vmem:[#allocation5] sm:$0xff]
    %v887 = vld [vmem:[#allocation5 + $0x8] sm:$0xff]
    %v888 = vld [vmem:[#allocation5 + $0x10] sm:$0xff]
    %v889 = vld [vmem:[#allocation5 + $0x18] sm:$0xff]
    %v890 = vld [vmem:[#allocation5 + $0x20] sm:$0xff]
    %v891 = vld [vmem:[#allocation5 + $0x28] sm:$0xff]
    %v892 = vld [vmem:[#allocation5 + $0x30] sm:$0xff]
    %v893 = vld [vmem:[#allocation5 + $0x38] sm:$0xff]
    %v894 = vld [vmem:[#allocation5 + $0x40] sm:$0xff]
    %v895 = vld [vmem:[#allocation5 + $0x48] sm:$0xff]
    %v896 = vld [vmem:[#allocation5 + $0x50] sm:$0xff]
    %v897 = vld [vmem:[#allocation5 + $0x58] sm:$0xff]
    %v898 = vld [vmem:[#allocation5 + $0x60] sm:$0xff]
    %v899 = vld [vmem:[#allocation5 + $0x68] sm:$0xff]
    %v900 = vld [vmem:[#allocation5 + $0x70] sm:$0xff]
    %v901 = vld [vmem:[#allocation5 + $0x78] sm:$0xff]
    %v902 = vsel %vm789, 1, 0
    %vm903 = vcmp.eq.s32.totalorder %v902, 1
    %vm904 = vmand %vm870, %vm903
    %vm905 = vmand %vm871, %vm903
    %vm906 = vmand %vm872, %vm903
    %vm907 = vmand %vm873, %vm903
    %vm908 = vmand %vm874, %vm903
    %vm909 = vmand %vm875, %vm903
    %vm910 = vmand %vm876, %vm903
    %vm911 = vmand %vm877, %vm903
    %vm912 = vmand %vm878, %vm903
    %vm913 = vmand %vm879, %vm903
    %vm914 = vmand %vm880, %vm903
    %vm915 = vmand %vm881, %vm903
    %vm916 = vmand %vm882, %vm903
    %vm917 = vmand %vm883, %vm903
    %vm918 = vmand %vm884, %vm903
    %vm919 = vmand %vm885, %vm903
    %v920 = vsel %vm904, %v671, 0.0
    %v921 = vsel %vm905, %v676, 0.0
    %v922 = vsel %vm906, %v681, 0.0
    %v923 = vsel %vm907, %v686, 0.0
    %v924 = vsel %vm908, %v691, 0.0
    %v925 = vsel %vm909, %v696, 0.0
    %v926 = vsel %vm910, %v701, 0.0
    %v927 = vsel %vm911, %v706, 0.0
    %v928 = vsel %vm912, %v711, 0.0
    %v929 = vsel %vm913, %v716, 0.0
    %v930 = vsel %vm914, %v721, 0.0
    %v931 = vsel %vm915, %v726, 0.0
    %v932 = vsel %vm916, %v731, 0.0
    %v933 = vsel %vm917, %v736, 0.0
    %v934 = vsel %vm918, %v741, 0.0
    %v935 = vsel %vm919, %v746, 0.0
    %936 = vadd.xlane.f32.xlu0 %v920
    %v937 = vpop.xlane.xlu0 %936
    %938 = vadd.xlane.f32.xlu0 %v921
    %v939 = vpop.xlane.xlu0 %938
    %940 = vadd.xlane.f32.xlu0 %v922
    %v941 = vpop.xlane.xlu0 %940
    %942 = vadd.xlane.f32.xlu0 %v923
    %v943 = vpop.xlane.xlu0 %942
    %944 = vadd.xlane.f32.xlu0 %v924
    %v945 = vpop.xlane.xlu0 %944
    %946 = vadd.xlane.f32.xlu0 %v925
    %v947 = vpop.xlane.xlu0 %946
    %948 = vadd.xlane.f32.xlu0 %v926
    %v949 = vpop.xlane.xlu0 %948
    %950 = vadd.xlane.f32.xlu0 %v927
    %v951 = vpop.xlane.xlu0 %950
    %952 = vadd.xlane.f32.xlu0 %v928
    %v953 = vpop.xlane.xlu0 %952
    %954 = vadd.xlane.f32.xlu0 %v929
    %v955 = vpop.xlane.xlu0 %954
    %956 = vadd.xlane.f32.xlu0 %v930
    %v957 = vpop.xlane.xlu0 %956
    %958 = vadd.xlane.f32.xlu0 %v931
    %v959 = vpop.xlane.xlu0 %958
    %960 = vadd.xlane.f32.xlu0 %v932
    %v961 = vpop.xlane.xlu0 %960
    %962 = vadd.xlane.f32.xlu0 %v933
    %v963 = vpop.xlane.xlu0 %962
    %964 = vadd.xlane.f32.xlu0 %v934
    %v965 = vpop.xlane.xlu0 %964
    %966 = vadd.xlane.f32.xlu0 %v935
    %v967 = vpop.xlane.xlu0 %966
    %v968 = vadd.f32 %v886, %v937
    %v969 = vadd.f32 %v887, %v939
    %v970 = vadd.f32 %v888, %v941
    %v971 = vadd.f32 %v889, %v943
    %v972 = vadd.f32 %v890, %v945
    %v973 = vadd.f32 %v891, %v947
    %v974 = vadd.f32 %v892, %v949
    %v975 = vadd.f32 %v893, %v951
    %v976 = vadd.f32 %v894, %v953
    %v977 = vadd.f32 %v895, %v955
    %v978 = vadd.f32 %v896, %v957
    %v979 = vadd.f32 %v897, %v959
    %v980 = vadd.f32 %v898, %v961
    %v981 = vadd.f32 %v899, %v963
    %v982 = vadd.f32 %v900, %v965
    %v983 = vadd.f32 %v901, %v967
    %vm984 = vcmask 7168
    %985 = vst.msk [vmem:[#allocation5] sm:$0xff] %vm984, %v968
    %986 = vst.msk [vmem:[#allocation5 + $0x8] sm:$0xff] %vm984, %v969
    %987 = vst.msk [vmem:[#allocation5 + $0x10] sm:$0xff] %vm984, %v970
    %988 = vst.msk [vmem:[#allocation5 + $0x18] sm:$0xff] %vm984, %v971
    %989 = vst.msk [vmem:[#allocation5 + $0x20] sm:$0xff] %vm984, %v972
    %990 = vst.msk [vmem:[#allocation5 + $0x28] sm:$0xff] %vm984, %v973
    %991 = vst.msk [vmem:[#allocation5 + $0x30] sm:$0xff] %vm984, %v974
    %992 = vst.msk [vmem:[#allocation5 + $0x38] sm:$0xff] %vm984, %v975
    %993 = vst.msk [vmem:[#allocation5 + $0x40] sm:$0xff] %vm984, %v976
    %994 = vst.msk [vmem:[#allocation5 + $0x48] sm:$0xff] %vm984, %v977
    %995 = vst.msk [vmem:[#allocation5 + $0x50] sm:$0xff] %vm984, %v978
    %996 = vst.msk [vmem:[#allocation5 + $0x58] sm:$0xff] %vm984, %v979
    %997 = vst.msk [vmem:[#allocation5 + $0x60] sm:$0xff] %vm984, %v980
    %998 = vst.msk [vmem:[#allocation5 + $0x68] sm:$0xff] %vm984, %v981
    %999 = vst.msk [vmem:[#allocation5 + $0x70] sm:$0xff] %vm984, %v982
    %1000 = vst.msk [vmem:[#allocation5 + $0x78] sm:$0xff] %vm984, %v983
    %vm1001 = vmxor %vm790, 1
    %vm1002 = vmxor %vm791, 1
    %vm1003 = vmxor %vm792, 1
    %vm1004 = vmxor %vm793, 1
    %vm1005 = vmxor %vm794, 1
    %vm1006 = vmxor %vm795, 1
    %vm1007 = vmxor %vm796, 1
    %vm1008 = vmxor %vm797, 1
    %vm1009 = vmxor %vm798, 1
    %vm1010 = vmxor %vm799, 1
    %vm1011 = vmxor %vm800, 1
    %vm1012 = vmxor %vm801, 1
    %vm1013 = vmxor %vm802, 1
    %vm1014 = vmxor %vm803, 1
    %vm1015 = vmxor %vm804, 1
    %vm1016 = vmxor %vm805, 1
    %vm1017 = vmand %vm903, %vm1001
    %vm1018 = vmand %vm903, %vm1002
    %vm1019 = vmand %vm903, %vm1003
    %vm1020 = vmand %vm903, %vm1004
    %vm1021 = vmand %vm903, %vm1005
    %vm1022 = vmand %vm903, %vm1006
    %vm1023 = vmand %vm903, %vm1007
    %vm1024 = vmand %vm903, %vm1008
    %vm1025 = vmand %vm903, %vm1009
    %vm1026 = vmand %vm903, %vm1010
    %vm1027 = vmand %vm903, %vm1011
    %vm1028 = vmand %vm903, %vm1012
    %vm1029 = vmand %vm903, %vm1013
    %vm1030 = vmand %vm903, %vm1014
    %vm1031 = vmand %vm903, %vm1015
    %vm1032 = vmand %vm903, %vm1016
    %v1033 = vsel %vm1017, %v671, -1e+30
    %v1034 = vsel %vm1018, %v676, -1e+30
    %v1035 = vsel %vm1019, %v681, -1e+30
    %v1036 = vsel %vm1020, %v686, -1e+30
    %v1037 = vsel %vm1021, %v691, -1e+30
    %v1038 = vsel %vm1022, %v696, -1e+30
    %v1039 = vsel %vm1023, %v701, -1e+30
    %v1040 = vsel %vm1024, %v706, -1e+30
    %v1041 = vsel %vm1025, %v711, -1e+30
    %v1042 = vsel %vm1026, %v716, -1e+30
    %v1043 = vsel %vm1027, %v721, -1e+30
    %v1044 = vsel %vm1028, %v726, -1e+30
    %v1045 = vsel %vm1029, %v731, -1e+30
    %v1046 = vsel %vm1030, %v736, -1e+30
    %v1047 = vsel %vm1031, %v741, -1e+30
    %v1048 = vsel %vm1032, %v746, -1e+30
    %v1049 = vld [vmem:[#allocation3] sm:$0xff]
    %v1050 = vld [vmem:[#allocation3 + $0x8] sm:$0xff]
    %v1051 = vld [vmem:[#allocation3 + $0x10] sm:$0xff]
    %v1052 = vld [vmem:[#allocation3 + $0x18] sm:$0xff]
    %v1053 = vld [vmem:[#allocation3 + $0x20] sm:$0xff]
    %v1054 = vld [vmem:[#allocation3 + $0x28] sm:$0xff]
    %v1055 = vld [vmem:[#allocation3 + $0x30] sm:$0xff]
    %v1056 = vld [vmem:[#allocation3 + $0x38] sm:$0xff]
    %v1057 = vld [vmem:[#allocation3 + $0x40] sm:$0xff]
    %v1058 = vld [vmem:[#allocation3 + $0x48] sm:$0xff]
    %v1059 = vld [vmem:[#allocation3 + $0x50] sm:$0xff]
    %v1060 = vld [vmem:[#allocation3 + $0x58] sm:$0xff]
    %v1061 = vld [vmem:[#allocation3 + $0x60] sm:$0xff]
    %v1062 = vld [vmem:[#allocation3 + $0x68] sm:$0xff]
    %v1063 = vld [vmem:[#allocation3 + $0x70] sm:$0xff]
    %v1064 = vld [vmem:[#allocation3 + $0x78] sm:$0xff]
    %1065 = vmax.xlane.f32.xlu0 %v1033
    %v1066 = vpop.xlane.xlu0 %1065
    %1067 = vmax.xlane.f32.xlu0 %v1034
    %v1068 = vpop.xlane.xlu0 %1067
    %1069 = vmax.xlane.f32.xlu0 %v1035
    %v1070 = vpop.xlane.xlu0 %1069
    %1071 = vmax.xlane.f32.xlu0 %v1036
    %v1072 = vpop.xlane.xlu0 %1071
    %1073 = vmax.xlane.f32.xlu0 %v1037
    %v1074 = vpop.xlane.xlu0 %1073
    %1075 = vmax.xlane.f32.xlu0 %v1038
    %v1076 = vpop.xlane.xlu0 %1075
    %1077 = vmax.xlane.f32.xlu0 %v1039
    %v1078 = vpop.xlane.xlu0 %1077
    %1079 = vmax.xlane.f32.xlu0 %v1040
    %v1080 = vpop.xlane.xlu0 %1079
    %1081 = vmax.xlane.f32.xlu0 %v1041
    %v1082 = vpop.xlane.xlu0 %1081
    %1083 = vmax.xlane.f32.xlu0 %v1042
    %v1084 = vpop.xlane.xlu0 %1083
    %1085 = vmax.xlane.f32.xlu0 %v1043
    %v1086 = vpop.xlane.xlu0 %1085
    %1087 = vmax.xlane.f32.xlu0 %v1044
    %v1088 = vpop.xlane.xlu0 %1087
    %1089 = vmax.xlane.f32.xlu0 %v1045
    %v1090 = vpop.xlane.xlu0 %1089
    %1091 = vmax.xlane.f32.xlu0 %v1046
    %v1092 = vpop.xlane.xlu0 %1091
    %1093 = vmax.xlane.f32.xlu0 %v1047
    %v1094 = vpop.xlane.xlu0 %1093
    %1095 = vmax.xlane.f32.xlu0 %v1048
    %v1096 = vpop.xlane.xlu0 %1095
    %v1097 = vmax.f32 %v1049, %v1066
    %v1098 = vmax.f32 %v1050, %v1068
    %v1099 = vmax.f32 %v1051, %v1070
    %v1100 = vmax.f32 %v1052, %v1072
    %v1101 = vmax.f32 %v1053, %v1074
    %v1102 = vmax.f32 %v1054, %v1076
    %v1103 = vmax.f32 %v1055, %v1078
    %v1104 = vmax.f32 %v1056, %v1080
    %v1105 = vmax.f32 %v1057, %v1082
    %v1106 = vmax.f32 %v1058, %v1084
    %v1107 = vmax.f32 %v1059, %v1086
    %v1108 = vmax.f32 %v1060, %v1088
    %v1109 = vmax.f32 %v1061, %v1090
    %v1110 = vmax.f32 %v1062, %v1092
    %v1111 = vmax.f32 %v1063, %v1094
    %v1112 = vmax.f32 %v1064, %v1096
    %v1113 = vsub.f32 %v1049, %v1097
    %v1114 = vsub.f32 %v1050, %v1098
    %v1115 = vsub.f32 %v1051, %v1099
    %v1116 = vsub.f32 %v1052, %v1100
    %v1117 = vsub.f32 %v1053, %v1101
    %v1118 = vsub.f32 %v1054, %v1102
    %v1119 = vsub.f32 %v1055, %v1103
    %v1120 = vsub.f32 %v1056, %v1104
    %v1121 = vsub.f32 %v1057, %v1105
    %v1122 = vsub.f32 %v1058, %v1106
    %v1123 = vsub.f32 %v1059, %v1107
    %v1124 = vsub.f32 %v1060, %v1108
    %v1125 = vsub.f32 %v1061, %v1109
    %v1126 = vsub.f32 %v1062, %v1110
    %v1127 = vsub.f32 %v1063, %v1111
    %v1128 = vsub.f32 %v1064, %v1112
    %v1129 = vmul.f32 %v1113, 1.442695
    %v1130 = vpow.pop %v1129
    %v1131 = vmul.f32 %v1114, 1.442695
    %v1132 = vpow.pop %v1131
    %v1133 = vmul.f32 %v1115, 1.442695
    %v1134 = vpow.pop %v1133
    %v1135 = vmul.f32 %v1116, 1.442695
    %v1136 = vpow.pop %v1135
    %v1137 = vmul.f32 %v1117, 1.442695
    %v1138 = vpow.pop %v1137
    %v1139 = vmul.f32 %v1118, 1.442695
    %v1140 = vpow.pop %v1139
    %v1141 = vmul.f32 %v1119, 1.442695
    %v1142 = vpow.pop %v1141
    %v1143 = vmul.f32 %v1120, 1.442695
    %v1144 = vpow.pop %v1143
    %v1145 = vmul.f32 %v1121, 1.442695
    %v1146 = vpow.pop %v1145
    %v1147 = vmul.f32 %v1122, 1.442695
    %v1148 = vpow.pop %v1147
    %v1149 = vmul.f32 %v1123, 1.442695
    %v1150 = vpow.pop %v1149
    %v1151 = vmul.f32 %v1124, 1.442695
    %v1152 = vpow.pop %v1151
    %v1153 = vmul.f32 %v1125, 1.442695
    %v1154 = vpow.pop %v1153
    %v1155 = vmul.f32 %v1126, 1.442695
    %v1156 = vpow.pop %v1155
    %v1157 = vmul.f32 %v1127, 1.442695
    %v1158 = vpow.pop %v1157
    %v1159 = vmul.f32 %v1128, 1.442695
    %v1160 = vpow.pop %v1159
    %v1161 = vld [vmem:[#allocation4] sm:$0xff]
    %v1162 = vld [vmem:[#allocation4 + $0x8] sm:$0xff]
    %v1163 = vld [vmem:[#allocation4 + $0x10] sm:$0xff]
    %v1164 = vld [vmem:[#allocation4 + $0x18] sm:$0xff]
    %v1165 = vld [vmem:[#allocation4 + $0x20] sm:$0xff]
    %v1166 = vld [vmem:[#allocation4 + $0x28] sm:$0xff]
    %v1167 = vld [vmem:[#allocation4 + $0x30] sm:$0xff]
    %v1168 = vld [vmem:[#allocation4 + $0x38] sm:$0xff]
    %v1169 = vld [vmem:[#allocation4 + $0x40] sm:$0xff]
    %v1170 = vld [vmem:[#allocation4 + $0x48] sm:$0xff]
    %v1171 = vld [vmem:[#allocation4 + $0x50] sm:$0xff]
    %v1172 = vld [vmem:[#allocation4 + $0x58] sm:$0xff]
    %v1173 = vld [vmem:[#allocation4 + $0x60] sm:$0xff]
    %v1174 = vld [vmem:[#allocation4 + $0x68] sm:$0xff]
    %v1175 = vld [vmem:[#allocation4 + $0x70] sm:$0xff]
    %v1176 = vld [vmem:[#allocation4 + $0x78] sm:$0xff]
    %v1177 = vmul.f32 %v1130, %v1161
    %v1178 = vmul.f32 %v1132, %v1162
    %v1179 = vmul.f32 %v1134, %v1163
    %v1180 = vmul.f32 %v1136, %v1164
    %v1181 = vmul.f32 %v1138, %v1165
    %v1182 = vmul.f32 %v1140, %v1166
    %v1183 = vmul.f32 %v1142, %v1167
    %v1184 = vmul.f32 %v1144, %v1168
    %v1185 = vmul.f32 %v1146, %v1169
    %v1186 = vmul.f32 %v1148, %v1170
    %v1187 = vmul.f32 %v1150, %v1171
    %v1188 = vmul.f32 %v1152, %v1172
    %v1189 = vmul.f32 %v1154, %v1173
    %v1190 = vmul.f32 %v1156, %v1174
    %v1191 = vmul.f32 %v1158, %v1175
    %v1192 = vmul.f32 %v1160, %v1176
    %1194 = vset.pattern.permute.xlu0 0
    %1195 = vperm.xlu0 %1194, %v1097
    %v1196 = vpop.permute.xlu0 %1195
    %1199 = vset.pattern.permute.xlu0 0
    %1200 = vperm.xlu0 %1199, %v1098
    %v1201 = vpop.permute.xlu0 %1200
    %1204 = vset.pattern.permute.xlu0 0
    %1205 = vperm.xlu0 %1204, %v1099
    %v1206 = vpop.permute.xlu0 %1205
    %1209 = vset.pattern.permute.xlu0 0
    %1210 = vperm.xlu0 %1209, %v1100
    %v1211 = vpop.permute.xlu0 %1210
    %1214 = vset.pattern.permute.xlu0 0
    %1215 = vperm.xlu0 %1214, %v1101
    %v1216 = vpop.permute.xlu0 %1215
    %1219 = vset.pattern.permute.xlu0 0
    %1220 = vperm.xlu0 %1219, %v1102
    %v1221 = vpop.permute.xlu0 %1220
    %1224 = vset.pattern.permute.xlu0 0
    %1225 = vperm.xlu0 %1224, %v1103
    %v1226 = vpop.permute.xlu0 %1225
    %1229 = vset.pattern.permute.xlu0 0
    %1230 = vperm.xlu0 %1229, %v1104
    %v1231 = vpop.permute.xlu0 %1230
    %1234 = vset.pattern.permute.xlu0 0
    %1235 = vperm.xlu0 %1234, %v1105
    %v1236 = vpop.permute.xlu0 %1235
    %1239 = vset.pattern.permute.xlu0 0
    %1240 = vperm.xlu0 %1239, %v1106
    %v1241 = vpop.permute.xlu0 %1240
    %1244 = vset.pattern.permute.xlu0 0
    %1245 = vperm.xlu0 %1244, %v1107
    %v1246 = vpop.permute.xlu0 %1245
    %1249 = vset.pattern.permute.xlu0 0
    %1250 = vperm.xlu0 %1249, %v1108
    %v1251 = vpop.permute.xlu0 %1250
    %1254 = vset.pattern.permute.xlu0 0
    %1255 = vperm.xlu0 %1254, %v1109
    %v1256 = vpop.permute.xlu0 %1255
    %1259 = vset.pattern.permute.xlu0 0
    %1260 = vperm.xlu0 %1259, %v1110
    %v1261 = vpop.permute.xlu0 %1260
    %1264 = vset.pattern.permute.xlu0 0
    %1265 = vperm.xlu0 %1264, %v1111
    %v1266 = vpop.permute.xlu0 %1265
    %1269 = vset.pattern.permute.xlu0 0
    %1270 = vperm.xlu0 %1269, %v1112
    %v1271 = vpop.permute.xlu0 %1270
    %v1273 = vsub.f32 %v1033, %v1196
    %v1274 = vsub.f32 %v1034, %v1201
    %v1275 = vsub.f32 %v1035, %v1206
    %v1276 = vsub.f32 %v1036, %v1211
    %v1277 = vsub.f32 %v1037, %v1216
    %v1278 = vsub.f32 %v1038, %v1221
    %v1279 = vsub.f32 %v1039, %v1226
    %v1280 = vsub.f32 %v1040, %v1231
    %v1281 = vsub.f32 %v1041, %v1236
    %v1282 = vsub.f32 %v1042, %v1241
    %v1283 = vsub.f32 %v1043, %v1246
    %v1284 = vsub.f32 %v1044, %v1251
    %v1285 = vsub.f32 %v1045, %v1256
    %v1286 = vsub.f32 %v1046, %v1261
    %v1287 = vsub.f32 %v1047, %v1266
    %v1288 = vsub.f32 %v1048, %v1271
    %v1289 = vmul.f32 %v1273, 1.442695
    %v1290 = vpow.pop %v1289
    %v1291 = vmul.f32 %v1274, 1.442695
    %v1292 = vpow.pop %v1291
    %v1293 = vmul.f32 %v1275, 1.442695
    %v1294 = vpow.pop %v1293
    %v1295 = vmul.f32 %v1276, 1.442695
    %v1296 = vpow.pop %v1295
    %v1297 = vmul.f32 %v1277, 1.442695
    %v1298 = vpow.pop %v1297
    %v1299 = vmul.f32 %v1278, 1.442695
    %v1300 = vpow.pop %v1299
    %v1301 = vmul.f32 %v1279, 1.442695
    %v1302 = vpow.pop %v1301
    %v1303 = vmul.f32 %v1280, 1.442695
    %v1304 = vpow.pop %v1303
    %v1305 = vmul.f32 %v1281, 1.442695
    %v1306 = vpow.pop %v1305
    %v1307 = vmul.f32 %v1282, 1.442695
    %v1308 = vpow.pop %v1307
    %v1309 = vmul.f32 %v1283, 1.442695
    %v1310 = vpow.pop %v1309
    %v1311 = vmul.f32 %v1284, 1.442695
    %v1312 = vpow.pop %v1311
    %v1313 = vmul.f32 %v1285, 1.442695
    %v1314 = vpow.pop %v1313
    %v1315 = vmul.f32 %v1286, 1.442695
    %v1316 = vpow.pop %v1315
    %v1317 = vmul.f32 %v1287, 1.442695
    %v1318 = vpow.pop %v1317
    %v1319 = vmul.f32 %v1288, 1.442695
    %v1320 = vpow.pop %v1319
    %1321 = vadd.xlane.f32.xlu0 %v1290
    %v1322 = vpop.xlane.xlu0 %1321
    %1323 = vadd.xlane.f32.xlu0 %v1292
    %v1324 = vpop.xlane.xlu0 %1323
    %1325 = vadd.xlane.f32.xlu0 %v1294
    %v1326 = vpop.xlane.xlu0 %1325
    %1327 = vadd.xlane.f32.xlu0 %v1296
    %v1328 = vpop.xlane.xlu0 %1327
    %1329 = vadd.xlane.f32.xlu0 %v1298
    %v1330 = vpop.xlane.xlu0 %1329
    %1331 = vadd.xlane.f32.xlu0 %v1300
    %v1332 = vpop.xlane.xlu0 %1331
    %1333 = vadd.xlane.f32.xlu0 %v1302
    %v1334 = vpop.xlane.xlu0 %1333
    %1335 = vadd.xlane.f32.xlu0 %v1304
    %v1336 = vpop.xlane.xlu0 %1335
    %1337 = vadd.xlane.f32.xlu0 %v1306
    %v1338 = vpop.xlane.xlu0 %1337
    %1339 = vadd.xlane.f32.xlu0 %v1308
    %v1340 = vpop.xlane.xlu0 %1339
    %1341 = vadd.xlane.f32.xlu0 %v1310
    %v1342 = vpop.xlane.xlu0 %1341
    %1343 = vadd.xlane.f32.xlu0 %v1312
    %v1344 = vpop.xlane.xlu0 %1343
    %1345 = vadd.xlane.f32.xlu0 %v1314
    %v1346 = vpop.xlane.xlu0 %1345
    %1347 = vadd.xlane.f32.xlu0 %v1316
    %v1348 = vpop.xlane.xlu0 %1347
    %1349 = vadd.xlane.f32.xlu0 %v1318
    %v1350 = vpop.xlane.xlu0 %1349
    %1351 = vadd.xlane.f32.xlu0 %v1320
    %v1352 = vpop.xlane.xlu0 %1351
    %v1353 = vadd.f32 %v1177, %v1322
    %v1354 = vadd.f32 %v1178, %v1324
    %v1355 = vadd.f32 %v1179, %v1326
    %v1356 = vadd.f32 %v1180, %v1328
    %v1357 = vadd.f32 %v1181, %v1330
    %v1358 = vadd.f32 %v1182, %v1332
    %v1359 = vadd.f32 %v1183, %v1334
    %v1360 = vadd.f32 %v1184, %v1336
    %v1361 = vadd.f32 %v1185, %v1338
    %v1362 = vadd.f32 %v1186, %v1340
    %v1363 = vadd.f32 %v1187, %v1342
    %v1364 = vadd.f32 %v1188, %v1344
    %v1365 = vadd.f32 %v1189, %v1346
    %v1366 = vadd.f32 %v1190, %v1348
    %v1367 = vadd.f32 %v1191, %v1350
    %v1368 = vadd.f32 %v1192, %v1352
    %1369 = vst.msk [vmem:[#allocation4] sm:$0xff] %vm984, %v1353
    %1370 = vst.msk [vmem:[#allocation4 + $0x8] sm:$0xff] %vm984, %v1354
    %1371 = vst.msk [vmem:[#allocation4 + $0x10] sm:$0xff] %vm984, %v1355
    %1372 = vst.msk [vmem:[#allocation4 + $0x18] sm:$0xff] %vm984, %v1356
    %1373 = vst.msk [vmem:[#allocation4 + $0x20] sm:$0xff] %vm984, %v1357
    %1374 = vst.msk [vmem:[#allocation4 + $0x28] sm:$0xff] %vm984, %v1358
    %1375 = vst.msk [vmem:[#allocation4 + $0x30] sm:$0xff] %vm984, %v1359
    %1376 = vst.msk [vmem:[#allocation4 + $0x38] sm:$0xff] %vm984, %v1360
    %1377 = vst.msk [vmem:[#allocation4 + $0x40] sm:$0xff] %vm984, %v1361
    %1378 = vst.msk [vmem:[#allocation4 + $0x48] sm:$0xff] %vm984, %v1362
    %1379 = vst.msk [vmem:[#allocation4 + $0x50] sm:$0xff] %vm984, %v1363
    %1380 = vst.msk [vmem:[#allocation4 + $0x58] sm:$0xff] %vm984, %v1364
    %1381 = vst.msk [vmem:[#allocation4 + $0x60] sm:$0xff] %vm984, %v1365
    %1382 = vst.msk [vmem:[#allocation4 + $0x68] sm:$0xff] %vm984, %v1366
    %1383 = vst.msk [vmem:[#allocation4 + $0x70] sm:$0xff] %vm984, %v1367
    %1384 = vst.msk [vmem:[#allocation4 + $0x78] sm:$0xff] %vm984, %v1368
    %1385 = vst.msk [vmem:[#allocation3] sm:$0xff] %vm984, %v1097
    %1386 = vst.msk [vmem:[#allocation3 + $0x8] sm:$0xff] %vm984, %v1098
    %1387 = vst.msk [vmem:[#allocation3 + $0x10] sm:$0xff] %vm984, %v1099
    %1388 = vst.msk [vmem:[#allocation3 + $0x18] sm:$0xff] %vm984, %v1100
    %1389 = vst.msk [vmem:[#allocation3 + $0x20] sm:$0xff] %vm984, %v1101
    %1390 = vst.msk [vmem:[#allocation3 + $0x28] sm:$0xff] %vm984, %v1102
    %1391 = vst.msk [vmem:[#allocation3 + $0x30] sm:$0xff] %vm984, %v1103
    %1392 = vst.msk [vmem:[#allocation3 + $0x38] sm:$0xff] %vm984, %v1104
    %1393 = vst.msk [vmem:[#allocation3 + $0x40] sm:$0xff] %vm984, %v1105
    %1394 = vst.msk [vmem:[#allocation3 + $0x48] sm:$0xff] %vm984, %v1106
    %1395 = vst.msk [vmem:[#allocation3 + $0x50] sm:$0xff] %vm984, %v1107
    %1396 = vst.msk [vmem:[#allocation3 + $0x58] sm:$0xff] %vm984, %v1108
    %1397 = vst.msk [vmem:[#allocation3 + $0x60] sm:$0xff] %vm984, %v1109
    %1398 = vst.msk [vmem:[#allocation3 + $0x68] sm:$0xff] %vm984, %v1110
    %1399 = vst.msk [vmem:[#allocation3 + $0x70] sm:$0xff] %vm984, %v1111
    %1400 = vst.msk [vmem:[#allocation3 + $0x78] sm:$0xff] %vm984, %v1112
    // Predicated region
    $region22: #{tpu_custom_call.1} parent=1 // pred_check
      %p1401 = pneg %p39
    $region23: #{tpu_custom_call.1} parent=1 // pred_check_branch
      %1403 = sbr.rel (%p1401) target = $region25
    $region24: #{tpu_custom_call.1} parent=1 // pred_region
      %v1404 = vld [vmem:[#allocation5] sm:$0xff]
      %v1405 = vld [vmem:[#allocation5 + $0x8] sm:$0xff]
      %v1406 = vld [vmem:[#allocation5 + $0x10] sm:$0xff]
      %v1407 = vld [vmem:[#allocation5 + $0x18] sm:$0xff]
      %v1408 = vld [vmem:[#allocation5 + $0x20] sm:$0xff]
      %v1409 = vld [vmem:[#allocation5 + $0x28] sm:$0xff]
      %v1410 = vld [vmem:[#allocation5 + $0x30] sm:$0xff]
      %v1411 = vld [vmem:[#allocation5 + $0x38] sm:$0xff]
      %v1412 = vld [vmem:[#allocation5 + $0x40] sm:$0xff]
      %v1413 = vld [vmem:[#allocation5 + $0x48] sm:$0xff]
      %v1414 = vld [vmem:[#allocation5 + $0x50] sm:$0xff]
      %v1415 = vld [vmem:[#allocation5 + $0x58] sm:$0xff]
      %v1416 = vld [vmem:[#allocation5 + $0x60] sm:$0xff]
      %v1417 = vld [vmem:[#allocation5 + $0x68] sm:$0xff]
      %v1418 = vld [vmem:[#allocation5 + $0x70] sm:$0xff]
      %v1419 = vld [vmem:[#allocation5 + $0x78] sm:$0xff]
      %v1420 = vsub.f32 0.0, %v1404
      %v1421 = vsub.f32 0.0, %v1405
      %v1422 = vsub.f32 0.0, %v1406
      %v1423 = vsub.f32 0.0, %v1407
      %v1424 = vsub.f32 0.0, %v1408
      %v1425 = vsub.f32 0.0, %v1409
      %v1426 = vsub.f32 0.0, %v1410
      %v1427 = vsub.f32 0.0, %v1411
      %v1428 = vsub.f32 0.0, %v1412
      %v1429 = vsub.f32 0.0, %v1413
      %v1430 = vsub.f32 0.0, %v1414
      %v1431 = vsub.f32 0.0, %v1415
      %v1432 = vsub.f32 0.0, %v1416
      %v1433 = vsub.f32 0.0, %v1417
      %v1434 = vsub.f32 0.0, %v1418
      %v1435 = vsub.f32 0.0, %v1419
      %v1436 = vld [vmem:[#allocation3] sm:$0xff]
      %v1437 = vld [vmem:[#allocation3 + $0x8] sm:$0xff]
      %v1438 = vld [vmem:[#allocation3 + $0x10] sm:$0xff]
      %v1439 = vld [vmem:[#allocation3 + $0x18] sm:$0xff]
      %v1440 = vld [vmem:[#allocation3 + $0x20] sm:$0xff]
      %v1441 = vld [vmem:[#allocation3 + $0x28] sm:$0xff]
      %v1442 = vld [vmem:[#allocation3 + $0x30] sm:$0xff]
      %v1443 = vld [vmem:[#allocation3 + $0x38] sm:$0xff]
      %v1444 = vld [vmem:[#allocation3 + $0x40] sm:$0xff]
      %v1445 = vld [vmem:[#allocation3 + $0x48] sm:$0xff]
      %v1446 = vld [vmem:[#allocation3 + $0x50] sm:$0xff]
      %v1447 = vld [vmem:[#allocation3 + $0x58] sm:$0xff]
      %v1448 = vld [vmem:[#allocation3 + $0x60] sm:$0xff]
      %v1449 = vld [vmem:[#allocation3 + $0x68] sm:$0xff]
      %v1450 = vld [vmem:[#allocation3 + $0x70] sm:$0xff]
      %v1451 = vld [vmem:[#allocation3 + $0x78] sm:$0xff]
      %v1452 = vadd.f32 %v1420, %v1436
      %v1453 = vadd.f32 %v1421, %v1437
      %v1454 = vadd.f32 %v1422, %v1438
      %v1455 = vadd.f32 %v1423, %v1439
      %v1456 = vadd.f32 %v1424, %v1440
      %v1457 = vadd.f32 %v1425, %v1441
      %v1458 = vadd.f32 %v1426, %v1442
      %v1459 = vadd.f32 %v1427, %v1443
      %v1460 = vadd.f32 %v1428, %v1444
      %v1461 = vadd.f32 %v1429, %v1445
      %v1462 = vadd.f32 %v1430, %v1446
      %v1463 = vadd.f32 %v1431, %v1447
      %v1464 = vadd.f32 %v1432, %v1448
      %v1465 = vadd.f32 %v1433, %v1449
      %v1466 = vadd.f32 %v1434, %v1450
      %v1467 = vadd.f32 %v1435, %v1451
      %v1468 = vld [vmem:[#allocation4] sm:$0xff]
      %v1469 = vld [vmem:[#allocation4 + $0x8] sm:$0xff]
      %v1470 = vld [vmem:[#allocation4 + $0x10] sm:$0xff]
      %v1471 = vld [vmem:[#allocation4 + $0x18] sm:$0xff]
      %v1472 = vld [vmem:[#allocation4 + $0x20] sm:$0xff]
      %v1473 = vld [vmem:[#allocation4 + $0x28] sm:$0xff]
      %v1474 = vld [vmem:[#allocation4 + $0x30] sm:$0xff]
      %v1475 = vld [vmem:[#allocation4 + $0x38] sm:$0xff]
      %v1476 = vld [vmem:[#allocation4 + $0x40] sm:$0xff]
      %v1477 = vld [vmem:[#allocation4 + $0x48] sm:$0xff]
      %v1478 = vld [vmem:[#allocation4 + $0x50] sm:$0xff]
      %v1479 = vld [vmem:[#allocation4 + $0x58] sm:$0xff]
      %v1480 = vld [vmem:[#allocation4 + $0x60] sm:$0xff]
      %v1481 = vld [vmem:[#allocation4 + $0x68] sm:$0xff]
      %v1482 = vld [vmem:[#allocation4 + $0x70] sm:$0xff]
      %v1483 = vld [vmem:[#allocation4 + $0x78] sm:$0xff]
      %v1484 = vlog2.pop %v1468
      %v1485 = vmul.f32 %v1484, 0.6931472
      %v1486 = vlog2.pop %v1469
      %v1487 = vmul.f32 %v1486, 0.6931472
      %v1488 = vlog2.pop %v1470
      %v1489 = vmul.f32 %v1488, 0.6931472
      %v1490 = vlog2.pop %v1471
      %v1491 = vmul.f32 %v1490, 0.6931472
      %v1492 = vlog2.pop %v1472
      %v1493 = vmul.f32 %v1492, 0.6931472
      %v1494 = vlog2.pop %v1473
      %v1495 = vmul.f32 %v1494, 0.6931472
      %v1496 = vlog2.pop %v1474
      %v1497 = vmul.f32 %v1496, 0.6931472
      %v1498 = vlog2.pop %v1475
      %v1499 = vmul.f32 %v1498, 0.6931472
      %v1500 = vlog2.pop %v1476
      %v1501 = vmul.f32 %v1500, 0.6931472
      %v1502 = vlog2.pop %v1477
      %v1503 = vmul.f32 %v1502, 0.6931472
      %v1504 = vlog2.pop %v1478
      %v1505 = vmul.f32 %v1504, 0.6931472
      %v1506 = vlog2.pop %v1479
      %v1507 = vmul.f32 %v1506, 0.6931472
      %v1508 = vlog2.pop %v1480
      %v1509 = vmul.f32 %v1508, 0.6931472
      %v1510 = vlog2.pop %v1481
      %v1511 = vmul.f32 %v1510, 0.6931472
      %v1512 = vlog2.pop %v1482
      %v1513 = vmul.f32 %v1512, 0.6931472
      %v1514 = vlog2.pop %v1483
      %v1515 = vmul.f32 %v1514, 0.6931472
      %v1516 = vadd.f32 %v1452, %v1485
      %v1517 = vadd.f32 %v1453, %v1487
      %v1518 = vadd.f32 %v1454, %v1489
      %v1519 = vadd.f32 %v1455, %v1491
      %v1520 = vadd.f32 %v1456, %v1493
      %v1521 = vadd.f32 %v1457, %v1495
      %v1522 = vadd.f32 %v1458, %v1497
      %v1523 = vadd.f32 %v1459, %v1499
      %v1524 = vadd.f32 %v1460, %v1501
      %v1525 = vadd.f32 %v1461, %v1503
      %v1526 = vadd.f32 %v1462, %v1505
      %v1527 = vadd.f32 %v1463, %v1507
      %v1528 = vadd.f32 %v1464, %v1509
      %v1529 = vadd.f32 %v1465, %v1511
      %v1530 = vadd.f32 %v1466, %v1513
      %v1531 = vadd.f32 %v1467, %v1515
      %vm1532 = vcmp.lt.s32.totalorder %v768, 16
      %vm1533 = vcmp.lt.s32.totalorder %v769, 16
      %vm1534 = vcmp.lt.s32.totalorder %v770, 16
      %vm1535 = vcmp.lt.s32.totalorder %v771, 16
      %vm1536 = vcmp.lt.s32.totalorder %v772, 16
      %vm1537 = vcmp.lt.s32.totalorder %v773, 16
      %vm1538 = vcmp.lt.s32.totalorder %v774, 16
      %vm1539 = vcmp.lt.s32.totalorder %v775, 16
      %vm1540 = vcmp.lt.s32.totalorder %v776, 16
      %vm1541 = vcmp.lt.s32.totalorder %v777, 16
      %vm1542 = vcmp.lt.s32.totalorder %v778, 16
      %vm1543 = vcmp.lt.s32.totalorder %v779, 16
      %vm1544 = vcmp.lt.s32.totalorder %v780, 16
      %vm1545 = vcmp.lt.s32.totalorder %v781, 16
      %vm1546 = vcmp.lt.s32.totalorder %v782, 16
      %vm1547 = vcmp.lt.s32.totalorder %v783, 16
      %v1548 = vsel %vm1532, %v1516, 0.0
      %v1549 = vsel %vm1533, %v1517, 0.0
      %v1550 = vsel %vm1534, %v1518, 0.0
      %v1551 = vsel %vm1535, %v1519, 0.0
      %v1552 = vsel %vm1536, %v1520, 0.0
      %v1553 = vsel %vm1537, %v1521, 0.0
      %v1554 = vsel %vm1538, %v1522, 0.0
      %v1555 = vsel %vm1539, %v1523, 0.0
      %v1556 = vsel %vm1540, %v1524, 0.0
      %v1557 = vsel %vm1541, %v1525, 0.0
      %v1558 = vsel %vm1542, %v1526, 0.0
      %v1559 = vsel %vm1543, %v1527, 0.0
      %v1560 = vsel %vm1544, %v1528, 0.0
      %v1561 = vsel %vm1545, %v1529, 0.0
      %v1562 = vsel %vm1546, %v1530, 0.0
      %v1563 = vsel %vm1547, %v1531, 0.0
      %1564 = vst.msk [vmem:[%s2] sm:$0xff] %vm984, %v1548
      %1565 = vst.msk [vmem:[%s2 + $0x8] sm:$0xff] %vm984, %v1549
      %1566 = vst.msk [vmem:[%s2 + $0x10] sm:$0xff] %vm984, %v1550
      %1567 = vst.msk [vmem:[%s2 + $0x18] sm:$0xff] %vm984, %v1551
      %1568 = vst.msk [vmem:[%s2 + $0x20] sm:$0xff] %vm984, %v1552
      %1569 = vst.msk [vmem:[%s2 + $0x28] sm:$0xff] %vm984, %v1553
      %1570 = vst.msk [vmem:[%s2 + $0x30] sm:$0xff] %vm984, %v1554
      %1571 = vst.msk [vmem:[%s2 + $0x38] sm:$0xff] %vm984, %v1555
      %1572 = vst.msk [vmem:[%s2 + $0x40] sm:$0xff] %vm984, %v1556
      %1573 = vst.msk [vmem:[%s2 + $0x48] sm:$0xff] %vm984, %v1557
      %1574 = vst.msk [vmem:[%s2 + $0x50] sm:$0xff] %vm984, %v1558
      %1575 = vst.msk [vmem:[%s2 + $0x58] sm:$0xff] %vm984, %v1559
      %1576 = vst.msk [vmem:[%s2 + $0x60] sm:$0xff] %vm984, %v1560
      %1577 = vst.msk [vmem:[%s2 + $0x68] sm:$0xff] %vm984, %v1561
      %1578 = vst.msk [vmem:[%s2 + $0x70] sm:$0xff] %vm984, %v1562
      %1579 = vst.msk [vmem:[%s2 + $0x78] sm:$0xff] %vm984, %v1563
    $region25: #{tpu_custom_call.1} parent=1 // pred_fallthru
      _
    // Predicated region
    $region26: #{tpu_custom_call.1} parent=1 // pred_check
      _
    $region27: #{tpu_custom_call.1} parent=1 // pred_check_branch
      %1581 = sbr.rel (0) target = $region29
    $region28: #{tpu_custom_call.1} parent=1 // pred_region
      _
    $region29: #{tpu_custom_call.1} parent=1 // pred_fallthru
      _
    // Predicated region
    $region30: #{tpu_custom_call.1} parent=1 // pred_check
      _
    $region31: #{tpu_custom_call.1} parent=1 // pred_check_branch
      %1583 = sbr.rel (0) target = $region33
    $region32: #{tpu_custom_call.1} parent=1 // pred_region
      _
    $region33: #{tpu_custom_call.1} parent=1 // pred_fallthru
      _
    %1584 = vsyncpa [#allocation7], 1
    %1585 = vsyncpa [#allocation9], 1

</llo_original>
